<compile_context>
chip_gen: v7x
topology: tpu7x:2x2x1
jax: 0.10.0
libtpu: 0.0.40
codegen_flags: <defaults>
</compile_context>

<pallas_src>
import math
from functools import partial

import jax
import jax.numpy as jnp
from jax.experimental import pallas as pl
from jax.experimental.pallas import tpu as pltpu


# ---------------------------------------------------------------------------
# In-kernel building blocks (values are (Bt, L, C): channels on lanes).
# ---------------------------------------------------------------------------
def _leaky(v, slope):
    return jnp.where(v > 0, v, slope * v)


def _conv1d(lbuf, v, w_ref, b_ref, k_size, dilation, *, norm, act, eps=1e-3):
    """Reflect-padded dilated 'same' Conv1d as ONE im2col MXU matmul.

    lbuf : VMEM scratch (Bt, >= L + 2*pad, C) f32 halo buffer (reused by all convs).
    v    : (Bt, L, Cin) f32 value.
    w_ref: (K*Cin, Cout) bf16 ref, row index = k*Cin + ci (tap-major flattened).
    b_ref: (1, Cout) f32 ref or None (cv1/cv3/conv_1 biases cancel under the
           affine=False InstanceNorm, so the wrapper does not pass them).
    """
    Bt, L, cin = v.shape
    cout = w_ref.shape[1]
    pad = ((k_size - 1) // 2) * dilation

    # Body rows + reflected halo rows, built inside VMEM. Halos are sourced from
    # the register-resident value v (no lbuf read-back in the prologue).
    for b in range(Bt):
        lbuf[b, pl.ds(pad, L), :] = v[b]
        for j in range(1, pad + 1):
            lbuf[b, pl.ds(pad - j, 1), :] = v[b, j:j + 1, :]
            lbuf[b, pl.ds(pad + L - 1 + j, 1), :] = v[b, L - 1 - j:L - j, :]

    # im2col: the K shifted (Bt, L, Cin) windows laid side by side on lanes ->
    # a single matmul with a K*Cin-deep contraction (fills the MXU depth).
    cols = jnp.concatenate(
        [lbuf[:, pl.ds(k * dilation, L), :] for k in range(k_size)], axis=-1)
    cols = cols.reshape(Bt * L, k_size * cin).astype(jnp.bfloat16)
    acc = jnp.dot(cols, w_ref[...], preferred_element_type=jnp.float32)
    acc = acc.reshape(Bt, L, cout)

    if b_ref is not None:
        acc = acc + b_ref[...]

    if norm:
        # InstanceNorm1d(eps=1e-3, affine=False): per (batch, channel) stats over
        # length, single pass (biased var). Fine at small L; two-pass when L-tiling.
        mean = jnp.mean(acc, axis=1, keepdims=True)
        mean_sq = jnp.mean(acc * acc, axis=1, keepdims=True)
        var = jnp.maximum(mean_sq - mean * mean, 0.0)
        acc = (acc - mean) * jax.lax.rsqrt(var + eps)
    if act:
        acc = acc * jax.nn.sigmoid(acc)          # SiLU
    return acc


def _maxpool_same(lbuf, v, k_size):
    """Stride-1 'same' MaxPool1d over length with -inf padding (torch semantics)."""
    Bt, L, cv = v.shape
    p = k_size // 2
    neg = jnp.full((p, cv), -jnp.inf, jnp.float32)
    for b in range(Bt):
        lbuf[b, pl.ds(p, L), pl.ds(0, cv)] = v[b]
        lbuf[b, pl.ds(0, p), pl.ds(0, cv)] = neg
        lbuf[b, pl.ds(p + L, p), pl.ds(0, cv)] = neg
    out = v
    for o in range(1, p + 1):
        out = jnp.maximum(
            out, jnp.maximum(lbuf[:, pl.ds(p - o, L), pl.ds(0, cv)],
                             lbuf[:, pl.ds(p + o, L), pl.ds(0, cv)]))
    return out


# ---------------------------------------------------------------------------
# Fully fused CIL_FilBlock forward kernel (one grid step per Bt batch elements).
# ---------------------------------------------------------------------------
def _filblock_kernel(x_ref, cv1_w, cv3_w, f_w, f_b, c1_w, o_ref, lbuf, *, dilation):
    Bt, C, L = x_ref.shape
    H = c1_w.shape[1]

    # Ingest NCL directly; one small in-kernel transpose replaces a wrapper
    # transpose (a full extra HBM read+write of x).
    x = jnp.transpose(x_ref[...], (0, 2, 1))                      # (Bt, L, C) f32

    # cv1 / cv3: Conv1d + InstanceNorm + SiLU (bias dropped: cancels in IN)
    x1 = _conv1d(lbuf, x, cv1_w, None, 3, dilation, norm=True, act=True)
    x2 = _conv1d(lbuf, x, cv3_w, None, 5, dilation, norm=True, act=True)

    # Four filter Conv1d (k=3/5/9/15, Cout=H/4 each) fused into one lane-dense
    # K=15 conv producing the channel-concatenated `filts` directly.
    # TODO(synk): un-fuse into tap-width groups when H//4 >= 128 (saves ~45% MXU work).
    filts = _conv1d(lbuf, x1, f_w, f_b, 15, dilation, norm=False, act=False)

    # conv_1: Conv1d(k=9, dilation=1) + InstanceNorm + SiLU
    c1 = _conv1d(lbuf, filts, c1_w, None, 9, 1, norm=True, act=True)

    # chunk(2, channels) -> MaxPool(3) / MaxPool(5) -> cat -> leaky_relu(0.2)
    half = H // 2
    if half % 128 == 0:
        pooled = jnp.concatenate(
            [_maxpool_same(lbuf, c1[..., :half], 3),
             _maxpool_same(lbuf, c1[..., half:], 5)], axis=-1)
    else:
        # sub-lane half (e.g. H=32): pool full width twice and iota-select
        p3 = _maxpool_same(lbuf, c1, 3)
        p5 = _maxpool_same(lbuf, c1, 5)
        ch = jax.lax.broadcasted_iota(jnp.int32, (Bt, L, H), 2)
        pooled = jnp.where(ch < half, p3, p5)

    out = _leaky(pooled, 0.2) + _leaky(x2, 0.2) + x
    o_ref[...] = jnp.transpose(out, (0, 2, 1)).astype(o_ref.dtype)  # back to NCL


# ---------------------------------------------------------------------------
# Host-side wrapper: weight packing + one pallas_call (no wrapper transposes).
# ---------------------------------------------------------------------------
def _im2col_weight(w):
    """torch (Cout, Cin, K) -> (K*Cin, Cout) bf16, row index = k*Cin + ci."""
    cout, cin, k = w.shape
    return jnp.transpose(w, (2, 1, 0)).reshape(k * cin, cout).astype(jnp.bfloat16)


def _bias2d(b):
    return b.reshape(1, -1).astype(jnp.float32)


def _fuse_filter_params(p):
    """Zero-pad each filter's taps to K=15 (centered) and concat along Cout."""
    ws, bs = [], []
    for i, k in enumerate((3, 5, 9, 15)):
        off = (15 - k) // 2
        ws.append(jnp.pad(p[f"f{i}_w"], ((0, 0), (0, 0), (off, off))))
        bs.append(p[f"f{i}_b"])
    return jnp.concatenate(ws, axis=0), jnp.concatenate(bs, axis=0)


def _pick_batch_tile(B, L):
    """Largest divisor of B with Bt*L <= ~128 matmul rows, keeping >= 2 grid
    steps whenever B >= 2 (so both v7x TensorCores get work)."""
    target = max(1, 128 // max(L, 1))
    cap = B if B < 2 else max(1, B // 2)
    bt = 1
    for cand in range(1, min(target, cap) + 1):
        if B % cand == 0:
            bt = cand
    return bt


def cil_filblock_forward(x_ncl, p, dilation):
    B, C, L = x_ncl.shape
    H = p["c1_w"].shape[0]
    assert C == H, "forward() requires input_size == hidden_size (x2 + x, cv3(x))"
    max_pad = max(7 * dilation, 4)
    assert max_pad < L, "reflect padding requires pad < sequence length"

    Bt = _pick_batch_tile(B, L)
    fw, fb = _fuse_filter_params(p)

    weights = (
        _im2col_weight(p["cv1_w"]),
        _im2col_weight(p["cv3_w"]),
        _im2col_weight(fw), _bias2d(fb),
        _im2col_weight(p["c1_w"]),
    )
    # cv1_b / cv3_b / c1_b intentionally not passed: affine=False InstanceNorm
    # subtracts the per-channel mean, so those biases cancel exactly.

    def const_spec(a):                 # full-array block, same for every grid step
        return pl.BlockSpec(a.shape, lambda b: (0,) * a.ndim)

    lbuf_rows = ((L + 2 * max_pad + 7) // 8) * 8       # round up to sublanes

    out = pl.pallas_call(
        partial(_filblock_kernel, dilation=dilation),
        out_shape=jax.ShapeDtypeStruct((B, H, L), jnp.float32),
        grid=(B // Bt,),
        in_specs=[pl.BlockSpec((Bt, C, L), lambda b: (b, 0, 0))]
                 + [const_spec(a) for a in weights],
        out_specs=pl.BlockSpec((Bt, H, L), lambda b: (b, 0, 0)),
        scratch_shapes=[pltpu.VMEM((Bt, lbuf_rows, H), jnp.float32)],
        compiler_params=pltpu.CompilerParams(
            dimension_semantics=("parallel",),
            vmem_limit_bytes=32 * 1024 * 1024),
    )(x_ncl, *weights)
    return out                                          # already NCL (B, C, L)


# ---------------------------------------------------------------------------
# Deterministic synthetic parameter init (shapes from the module's __init__)
# ---------------------------------------------------------------------------
def init_params(key, input_size, hidden_size):
    C, H = input_size, hidden_size
    hq = H // 4
    shapes = {
        "cv1_w": (H, C, 3),
        "cv3_w": (H, H, 5),
        "f0_w": (hq, C, 3),
        "f1_w": (hq, H, 5),
        "f2_w": (hq, H, 9),
        "f3_w": (hq, H, 15),
        "c1_w": (H, H, 9),
    }
    keys = jax.random.split(key, len(shapes) + 3)
    p = {}
    for i, (name, shp) in enumerate(shapes.items()):
        fan_in = shp[1] * shp[2]
        p[name] = jax.random.normal(keys[i], shp, jnp.float32) / math.sqrt(fan_in)
    # cv1 / cv3 / conv_1 biases exist in the module but cancel under InstanceNorm;
    # kept here for state-dict parity, unused by the kernel.
    p["cv1_b"] = 0.01 * jax.random.normal(keys[-3], (H,), jnp.float32)
    p["cv3_b"] = 0.01 * jax.random.normal(keys[-2], (H,), jnp.float32)
    p["c1_b"] = 0.01 * jax.random.normal(keys[-1], (H,), jnp.float32)
    # custom Conv1d filters: reset_parameters() zero-inits the bias
    for i in range(4):
        p[f"f{i}_b"] = jnp.zeros((hq,), jnp.float32)
    return p


if __name__ == "__main__":
    B, C, L = 2, 32, 16          # input_size == hidden_size required by forward()
    H, dilation = 32, 1
    key = jax.random.PRNGKey(0)
    kx, kp = jax.random.split(key)
    x = jax.random.normal(kx, (B, C, L), jnp.float32)
    params = init_params(kp, C, H)

    fwd = jax.jit(lambda xx: cil_filblock_forward(xx, params, dilation))
    out = fwd(x)
    jax.block_until_ready(out)
    assert out.shape == (B, C, L) and out.dtype == jnp.float32
    assert bool(jnp.all(jnp.isfinite(out)))
    print("KERNEL_OK")
</pallas_src>

<mosaic_0001>
module attributes {stable_mosaic.version = 11 : i64} {
  func.func @_filblock_kernel(%arg0: i32, %arg1: memref<1x32x16xf32, #tpu.memory_space<vmem>>, %arg2: memref<96x32xbf16, #tpu.memory_space<vmem>>, %arg3: memref<160x32xbf16, #tpu.memory_space<vmem>>, %arg4: memref<480x32xbf16, #tpu.memory_space<vmem>>, %arg5: memref<1x32xf32, #tpu.memory_space<vmem>>, %arg6: memref<288x32xbf16, #tpu.memory_space<vmem>>, %arg7: memref<1x32x16xf32, #tpu.memory_space<vmem>>, %arg8: memref<1x32x32xf32, #tpu.memory_space<vmem>>) attributes {dimension_semantics = [#tpu.dimension_semantics<parallel>], iteration_bounds = array<i64: 2>, scalar_prefetch = 0 : i64, scratch_operands = 1 : i64, tpu.core_type = #tpu.core_type<tc>, window_params = [{transform_indices = @transform_0, window_bounds = array<i64: 1, 32, 16>}, {pipeline_mode = #tpu.pipeline_mode<synchronous>, transform_indices = @transform_1, window_bounds = array<i64: 96, 32>}, {pipeline_mode = #tpu.pipeline_mode<synchronous>, transform_indices = @transform_2, window_bounds = array<i64: 160, 32>}, {pipeline_mode = #tpu.pipeline_mode<synchronous>, transform_indices = @transform_3, window_bounds = array<i64: 480, 32>}, {pipeline_mode = #tpu.pipeline_mode<synchronous>, transform_indices = @transform_4, window_bounds = array<i64: 1, 32>}, {pipeline_mode = #tpu.pipeline_mode<synchronous>, transform_indices = @transform_5, window_bounds = array<i64: 288, 32>}, {transform_indices = @transform_6, window_bounds = array<i64: 1, 32, 16>}]} {
    %c0 = arith.constant 0 : index
    %c0_0 = arith.constant 0 : index
    %c0_1 = arith.constant 0 : index
    %0 = vector.load %arg1[%c0, %c0_0, %c0_1] : memref<1x32x16xf32, #tpu.memory_space<vmem>>, vector<1x32x16xf32>
    %1 = tpu.transpose %0, [0, 2, 1] : vector<1x32x16xf32> -> vector<1x16x32xf32>
    %2 = vector.shape_cast %1 : vector<1x16x32xf32> to vector<16x32xf32>
    %c0_2 = arith.constant 0 : index
    %c1 = arith.constant 1 : index
    %c0_3 = arith.constant 0 : index
    %3 = vector.load %arg8[%c0_2, %c1, %c0_3] : memref<1x32x32xf32, #tpu.memory_space<vmem>>, vector<1x16x32xf32>
    %4 = vector.shape_cast %3 : vector<1x16x32xf32> to vector<16x32xf32>
    %5 = vector.shape_cast %2 : vector<16x32xf32> to vector<1x16x32xf32>
    tpu.vector_store %arg8[%c0_2, %c1, %c0_3], %5 {strides = array<i32>} : memref<1x32x32xf32, #tpu.memory_space<vmem>>, vector<1x16x32xf32>,
    %6 = vector.extract_strided_slice %1 {offsets = [0, 1, 0], sizes = [1, 1, 32], strides = [1, 1, 1]} : vector<1x16x32xf32> to vector<1x1x32xf32>
    %7 = vector.shape_cast %6 : vector<1x1x32xf32> to vector<1x32xf32>
    %c0_4 = arith.constant 0 : index
    %c0_5 = arith.constant 0 : index
    %c0_6 = arith.constant 0 : index
    %8 = vector.load %arg8[%c0_4, %c0_5, %c0_6] : memref<1x32x32xf32, #tpu.memory_space<vmem>>, vector<1x1x32xf32>
    %9 = vector.shape_cast %8 : vector<1x1x32xf32> to vector<1x32xf32>
    %10 = vector.shape_cast %7 : vector<1x32xf32> to vector<1x1x32xf32>
    tpu.vector_store %arg8[%c0_4, %c0_5, %c0_6], %10 {strides = array<i32>} : memref<1x32x32xf32, #tpu.memory_space<vmem>>, vector<1x1x32xf32>,
    %11 = vector.extract_strided_slice %1 {offsets = [0, 14, 0], sizes = [1, 1, 32], strides = [1, 1, 1]} : vector<1x16x32xf32> to vector<1x1x32xf32>
    %12 = vector.shape_cast %11 : vector<1x1x32xf32> to vector<1x32xf32>
    %c0_7 = arith.constant 0 : index
    %c17 = arith.constant 17 : index
    %c0_8 = arith.constant 0 : index
    %13 = vector.load %arg8[%c0_7, %c17, %c0_8] : memref<1x32x32xf32, #tpu.memory_space<vmem>>, vector<1x1x32xf32>
    %14 = vector.shape_cast %13 : vector<1x1x32xf32> to vector<1x32xf32>
    %15 = vector.shape_cast %12 : vector<1x32xf32> to vector<1x1x32xf32>
    tpu.vector_store %arg8[%c0_7, %c17, %c0_8], %15 {strides = array<i32>} : memref<1x32x32xf32, #tpu.memory_space<vmem>>, vector<1x1x32xf32>,
    %c0_9 = arith.constant 0 : index
    %c0_10 = arith.constant 0 : index
    %c0_11 = arith.constant 0 : index
    %16 = vector.load %arg8[%c0_9, %c0_10, %c0_11] : memref<1x32x32xf32, #tpu.memory_space<vmem>>, vector<1x16x32xf32>
    %c0_12 = arith.constant 0 : index
    %c1_13 = arith.constant 1 : index
    %c0_14 = arith.constant 0 : index
    %17 = vector.load %arg8[%c0_12, %c1_13, %c0_14] : memref<1x32x32xf32, #tpu.memory_space<vmem>>, vector<1x16x32xf32>
    %c0_15 = arith.constant 0 : index
    %c2 = arith.constant 2 : index
    %c0_16 = arith.constant 0 : index
    %18 = vector.load %arg8[%c0_15, %c2, %c0_16] : memref<1x32x32xf32, #tpu.memory_space<vmem>>, vector<1x16x32xf32>
    %19 = tpu.concatenate %16, %17, %18 in 2 : vector<1x16x32xf32>, vector<1x16x32xf32>, vector<1x16x32xf32> -> vector<1x16x96xf32>
    %20 = vector.shape_cast %19 : vector<1x16x96xf32> to vector<16x96xf32>
    %21 = arith.truncf %20 : vector<16x96xf32> to vector<16x96xbf16>
    %c0_17 = arith.constant 0 : index
    %c0_18 = arith.constant 0 : index
    %22 = vector.load %arg2[%c0_17, %c0_18] : memref<96x32xbf16, #tpu.memory_space<vmem>>, vector<96x32xbf16>
    %cst = arith.constant dense<0.000000e+00> : vector<16x32xf32>
    %23 = tpu.matmul %21, %22, %cst {dimension_numbers = #tpu.dot_dimension_numbers<[1], [0], [0], [1], [0, 0, 1, 1], [], []>} : vector<16x96xbf16>, vector<96x32xbf16>, vector<16x32xf32> -> vector<16x32xf32>
    %24 = vector.shape_cast %23 : vector<16x32xf32> to vector<1x16x32xf32>
    %cst_19 = arith.constant dense<0.000000e+00> : vector<1x32xf32>
    %25 = vector.multi_reduction <add>, %24, %cst_19 [1] : vector<1x16x32xf32> to vector<1x32xf32>
    %26 = vector.shape_cast %25 : vector<1x32xf32> to vector<1x1x32xf32>
    %cst_20 = arith.constant 1.600000e+01 : f32
    %27 = vector.broadcast %cst_20 : f32 to vector<1x1x32xf32>
    %28 = arith.divf %26, %27 : vector<1x1x32xf32>
    %29 = arith.mulf %24, %24 : vector<1x16x32xf32>
    %cst_21 = arith.constant dense<0.000000e+00> : vector<1x32xf32>
    %30 = vector.multi_reduction <add>, %29, %cst_21 [1] : vector<1x16x32xf32> to vector<1x32xf32>
    %31 = vector.shape_cast %30 : vector<1x32xf32> to vector<1x1x32xf32>
    %cst_22 = arith.constant 1.600000e+01 : f32
    %32 = vector.broadcast %cst_22 : f32 to vector<1x1x32xf32>
    %33 = arith.divf %31, %32 : vector<1x1x32xf32>
    %34 = arith.mulf %28, %28 : vector<1x1x32xf32>
    %35 = arith.subf %33, %34 : vector<1x1x32xf32>
    %cst_23 = arith.constant 0.000000e+00 : f32
    %36 = vector.broadcast %cst_23 : f32 to vector<1x1x32xf32>
    %37 = arith.maximumf %35, %36 : vector<1x1x32xf32>
    %38 = vector.broadcast %28 : vector<1x1x32xf32> to vector<1x16x32xf32>
    %39 = arith.subf %24, %38 : vector<1x16x32xf32>
    %cst_24 = arith.constant 1.000000e-03 : f32
    %40 = vector.broadcast %cst_24 : f32 to vector<1x1x32xf32>
    %41 = arith.addf %37, %40 : vector<1x1x32xf32>
    %42 = math.rsqrt %41 : vector<1x1x32xf32>
    %43 = vector.broadcast %42 : vector<1x1x32xf32> to vector<1x16x32xf32>
    %44 = arith.mulf %39, %43 : vector<1x16x32xf32>
    %45 = arith.negf %44 : vector<1x16x32xf32>
    %46 = math.exp %45 : vector<1x16x32xf32>
    %cst_25 = arith.constant 1.000000e+00 : f32
    %47 = vector.broadcast %cst_25 : f32 to vector<1x16x32xf32>
    %48 = arith.addf %47, %46 : vector<1x16x32xf32>
    %49 = arith.divf %47, %48 : vector<1x16x32xf32>
    %50 = arith.mulf %44, %49 : vector<1x16x32xf32>
    %51 = vector.shape_cast %1 : vector<1x16x32xf32> to vector<16x32xf32>
    %c0_26 = arith.constant 0 : index
    %c2_27 = arith.constant 2 : index
    %c0_28 = arith.constant 0 : index
    %52 = vector.load %arg8[%c0_26, %c2_27, %c0_28] : memref<1x32x32xf32, #tpu.memory_space<vmem>>, vector<1x16x32xf32>
    %53 = vector.shape_cast %52 : vector<1x16x32xf32> to vector<16x32xf32>
    %54 = vector.shape_cast %51 : vector<16x32xf32> to vector<1x16x32xf32>
    tpu.vector_store %arg8[%c0_26, %c2_27, %c0_28], %54 {strides = array<i32>} : memref<1x32x32xf32, #tpu.memory_space<vmem>>, vector<1x16x32xf32>,
    %55 = vector.extract_strided_slice %1 {offsets = [0, 1, 0], sizes = [1, 1, 32], strides = [1, 1, 1]} : vector<1x16x32xf32> to vector<1x1x32xf32>
    %56 = vector.shape_cast %55 : vector<1x1x32xf32> to vector<1x32xf32>
    %c0_29 = arith.constant 0 : index
    %c1_30 = arith.constant 1 : index
    %c0_31 = arith.constant 0 : index
    %57 = vector.load %arg8[%c0_29, %c1_30, %c0_31] : memref<1x32x32xf32, #tpu.memory_space<vmem>>, vector<1x1x32xf32>
    %58 = vector.shape_cast %57 : vector<1x1x32xf32> to vector<1x32xf32>
    %59 = vector.shape_cast %56 : vector<1x32xf32> to vector<1x1x32xf32>
    tpu.vector_store %arg8[%c0_29, %c1_30, %c0_31], %59 {strides = array<i32>} : memref<1x32x32xf32, #tpu.memory_space<vmem>>, vector<1x1x32xf32>,
    %60 = vector.extract_strided_slice %1 {offsets = [0, 14, 0], sizes = [1, 1, 32], strides = [1, 1, 1]} : vector<1x16x32xf32> to vector<1x1x32xf32>
    %61 = vector.shape_cast %60 : vector<1x1x32xf32> to vector<1x32xf32>
    %c0_32 = arith.constant 0 : index
    %c18 = arith.constant 18 : index
    %c0_33 = arith.constant 0 : index
    %62 = vector.load %arg8[%c0_32, %c18, %c0_33] : memref<1x32x32xf32, #tpu.memory_space<vmem>>, vector<1x1x32xf32>
    %63 = vector.shape_cast %62 : vector<1x1x32xf32> to vector<1x32xf32>
    %64 = vector.shape_cast %61 : vector<1x32xf32> to vector<1x1x32xf32>
    tpu.vector_store %arg8[%c0_32, %c18, %c0_33], %64 {strides = array<i32>} : memref<1x32x32xf32, #tpu.memory_space<vmem>>, vector<1x1x32xf32>,
    %65 = vector.extract_strided_slice %1 {offsets = [0, 2, 0], sizes = [1, 1, 32], strides = [1, 1, 1]} : vector<1x16x32xf32> to vector<1x1x32xf32>
    %66 = vector.shape_cast %65 : vector<1x1x32xf32> to vector<1x32xf32>
    %c0_34 = arith.constant 0 : index
    %c0_35 = arith.constant 0 : index
    %c0_36 = arith.constant 0 : index
    %67 = vector.load %arg8[%c0_34, %c0_35, %c0_36] : memref<1x32x32xf32, #tpu.memory_space<vmem>>, vector<1x1x32xf32>
    %68 = vector.shape_cast %67 : vector<1x1x32xf32> to vector<1x32xf32>
    %69 = vector.shape_cast %66 : vector<1x32xf32> to vector<1x1x32xf32>
    tpu.vector_store %arg8[%c0_34, %c0_35, %c0_36], %69 {strides = array<i32>} : memref<1x32x32xf32, #tpu.memory_space<vmem>>, vector<1x1x32xf32>,
    %70 = vector.extract_strided_slice %1 {offsets = [0, 13, 0], sizes = [1, 1, 32], strides = [1, 1, 1]} : vector<1x16x32xf32> to vector<1x1x32xf32>
    %71 = vector.shape_cast %70 : vector<1x1x32xf32> to vector<1x32xf32>
    %c0_37 = arith.constant 0 : index
    %c19 = arith.constant 19 : index
    %c0_38 = arith.constant 0 : index
    %72 = vector.load %arg8[%c0_37, %c19, %c0_38] : memref<1x32x32xf32, #tpu.memory_space<vmem>>, vector<1x1x32xf32>
    %73 = vector.shape_cast %72 : vector<1x1x32xf32> to vector<1x32xf32>
    %74 = vector.shape_cast %71 : vector<1x32xf32> to vector<1x1x32xf32>
    tpu.vector_store %arg8[%c0_37, %c19, %c0_38], %74 {strides = array<i32>} : memref<1x32x32xf32, #tpu.memory_space<vmem>>, vector<1x1x32xf32>,
    %c0_39 = arith.constant 0 : index
    %c0_40 = arith.constant 0 : index
    %c0_41 = arith.constant 0 : index
    %75 = vector.load %arg8[%c0_39, %c0_40, %c0_41] : memref<1x32x32xf32, #tpu.memory_space<vmem>>, vector<1x16x32xf32>
    %c0_42 = arith.constant 0 : index
    %c1_43 = arith.constant 1 : index
    %c0_44 = arith.constant 0 : index
    %76 = vector.load %arg8[%c0_42, %c1_43, %c0_44] : memref<1x32x32xf32, #tpu.memory_space<vmem>>, vector<1x16x32xf32>
    %c0_45 = arith.constant 0 : index
    %c2_46 = arith.constant 2 : index
    %c0_47 = arith.constant 0 : index
    %77 = vector.load %arg8[%c0_45, %c2_46, %c0_47] : memref<1x32x32xf32, #tpu.memory_space<vmem>>, vector<1x16x32xf32>
    %c0_48 = arith.constant 0 : index
    %c3 = arith.constant 3 : index
    %c0_49 = arith.constant 0 : index
    %78 = vector.load %arg8[%c0_48, %c3, %c0_49] : memref<1x32x32xf32, #tpu.memory_space<vmem>>, vector<1x16x32xf32>
    %c0_50 = arith.constant 0 : index
    %c4 = arith.constant 4 : index
    %c0_51 = arith.constant 0 : index
    %79 = vector.load %arg8[%c0_50, %c4, %c0_51] : memref<1x32x32xf32, #tpu.memory_space<vmem>>, vector<1x16x32xf32>
    %80 = tpu.concatenate %75, %76, %77, %78, %79 in 2 : vector<1x16x32xf32>, vector<1x16x32xf32>, vector<1x16x32xf32>, vector<1x16x32xf32>, vector<1x16x32xf32> -> vector<1x16x160xf32>
    %81 = vector.shape_cast %80 : vector<1x16x160xf32> to vector<16x160xf32>
    %82 = arith.truncf %81 : vector<16x160xf32> to vector<16x160xbf16>
    %c0_52 = arith.constant 0 : index
    %c0_53 = arith.constant 0 : index
    %83 = vector.load %arg3[%c0_52, %c0_53] : memref<160x32xbf16, #tpu.memory_space<vmem>>, vector<160x32xbf16>
    %cst_54 = arith.constant dense<0.000000e+00> : vector<16x32xf32>
    %84 = tpu.matmul %82, %83, %cst_54 {dimension_numbers = #tpu.dot_dimension_numbers<[1], [0], [0], [1], [0, 0, 1, 1], [], []>} : vector<16x160xbf16>, vector<160x32xbf16>, vector<16x32xf32> -> vector<16x32xf32>
    %85 = vector.shape_cast %84 : vector<16x32xf32> to vector<1x16x32xf32>
    %cst_55 = arith.constant dense<0.000000e+00> : vector<1x32xf32>
    %86 = vector.multi_reduction <add>, %85, %cst_55 [1] : vector<1x16x32xf32> to vector<1x32xf32>
    %87 = vector.shape_cast %86 : vector<1x32xf32> to vector<1x1x32xf32>
    %cst_56 = arith.constant 1.600000e+01 : f32
    %88 = vector.broadcast %cst_56 : f32 to vector<1x1x32xf32>
    %89 = arith.divf %87, %88 : vector<1x1x32xf32>
    %90 = arith.mulf %85, %85 : vector<1x16x32xf32>
    %cst_57 = arith.constant dense<0.000000e+00> : vector<1x32xf32>
    %91 = vector.multi_reduction <add>, %90, %cst_57 [1] : vector<1x16x32xf32> to vector<1x32xf32>
    %92 = vector.shape_cast %91 : vector<1x32xf32> to vector<1x1x32xf32>
    %cst_58 = arith.constant 1.600000e+01 : f32
    %93 = vector.broadcast %cst_58 : f32 to vector<1x1x32xf32>
    %94 = arith.divf %92, %93 : vector<1x1x32xf32>
    %95 = arith.mulf %89, %89 : vector<1x1x32xf32>
    %96 = arith.subf %94, %95 : vector<1x1x32xf32>
    %cst_59 = arith.constant 0.000000e+00 : f32
    %97 = vector.broadcast %cst_59 : f32 to vector<1x1x32xf32>
    %98 = arith.maximumf %96, %97 : vector<1x1x32xf32>
    %99 = vector.broadcast %89 : vector<1x1x32xf32> to vector<1x16x32xf32>
    %100 = arith.subf %85, %99 : vector<1x16x32xf32>
    %cst_60 = arith.constant 1.000000e-03 : f32
    %101 = vector.broadcast %cst_60 : f32 to vector<1x1x32xf32>
    %102 = arith.addf %98, %101 : vector<1x1x32xf32>
    %103 = math.rsqrt %102 : vector<1x1x32xf32>
    %104 = vector.broadcast %103 : vector<1x1x32xf32> to vector<1x16x32xf32>
    %105 = arith.mulf %100, %104 : vector<1x16x32xf32>
    %106 = arith.negf %105 : vector<1x16x32xf32>
    %107 = math.exp %106 : vector<1x16x32xf32>
    %cst_61 = arith.constant 1.000000e+00 : f32
    %108 = vector.broadcast %cst_61 : f32 to vector<1x16x32xf32>
    %109 = arith.addf %108, %107 : vector<1x16x32xf32>
    %110 = arith.divf %108, %109 : vector<1x16x32xf32>
    %111 = arith.mulf %105, %110 : vector<1x16x32xf32>
    %112 = vector.shape_cast %50 : vector<1x16x32xf32> to vector<16x32xf32>
    %c0_62 = arith.constant 0 : index
    %c7 = arith.constant 7 : index
    %c0_63 = arith.constant 0 : index
    %113 = vector.load %arg8[%c0_62, %c7, %c0_63] : memref<1x32x32xf32, #tpu.memory_space<vmem>>, vector<1x16x32xf32>
    %114 = vector.shape_cast %113 : vector<1x16x32xf32> to vector<16x32xf32>
    %115 = vector.shape_cast %112 : vector<16x32xf32> to vector<1x16x32xf32>
    tpu.vector_store %arg8[%c0_62, %c7, %c0_63], %115 {strides = array<i32>} : memref<1x32x32xf32, #tpu.memory_space<vmem>>, vector<1x16x32xf32>,
    %116 = vector.extract_strided_slice %50 {offsets = [0, 1, 0], sizes = [1, 1, 32], strides = [1, 1, 1]} : vector<1x16x32xf32> to vector<1x1x32xf32>
    %117 = vector.shape_cast %116 : vector<1x1x32xf32> to vector<1x32xf32>
    %c0_64 = arith.constant 0 : index
    %c6 = arith.constant 6 : index
    %c0_65 = arith.constant 0 : index
    %118 = vector.load %arg8[%c0_64, %c6, %c0_65] : memref<1x32x32xf32, #tpu.memory_space<vmem>>, vector<1x1x32xf32>
    %119 = vector.shape_cast %118 : vector<1x1x32xf32> to vector<1x32xf32>
    %120 = vector.shape_cast %117 : vector<1x32xf32> to vector<1x1x32xf32>
    tpu.vector_store %arg8[%c0_64, %c6, %c0_65], %120 {strides = array<i32>} : memref<1x32x32xf32, #tpu.memory_space<vmem>>, vector<1x1x32xf32>,
    %121 = vector.extract_strided_slice %50 {offsets = [0, 14, 0], sizes = [1, 1, 32], strides = [1, 1, 1]} : vector<1x16x32xf32> to vector<1x1x32xf32>
    %122 = vector.shape_cast %121 : vector<1x1x32xf32> to vector<1x32xf32>
    %c0_66 = arith.constant 0 : index
    %c23 = arith.constant 23 : index
    %c0_67 = arith.constant 0 : index
    %123 = vector.load %arg8[%c0_66, %c23, %c0_67] : memref<1x32x32xf32, #tpu.memory_space<vmem>>, vector<1x1x32xf32>
    %124 = vector.shape_cast %123 : vector<1x1x32xf32> to vector<1x32xf32>
    %125 = vector.shape_cast %122 : vector<1x32xf32> to vector<1x1x32xf32>
    tpu.vector_store %arg8[%c0_66, %c23, %c0_67], %125 {strides = array<i32>} : memref<1x32x32xf32, #tpu.memory_space<vmem>>, vector<1x1x32xf32>,
    %126 = vector.extract_strided_slice %50 {offsets = [0, 2, 0], sizes = [1, 1, 32], strides = [1, 1, 1]} : vector<1x16x32xf32> to vector<1x1x32xf32>
    %127 = vector.shape_cast %126 : vector<1x1x32xf32> to vector<1x32xf32>
    %c0_68 = arith.constant 0 : index
    %c5 = arith.constant 5 : index
    %c0_69 = arith.constant 0 : index
    %128 = vector.load %arg8[%c0_68, %c5, %c0_69] : memref<1x32x32xf32, #tpu.memory_space<vmem>>, vector<1x1x32xf32>
    %129 = vector.shape_cast %128 : vector<1x1x32xf32> to vector<1x32xf32>
    %130 = vector.shape_cast %127 : vector<1x32xf32> to vector<1x1x32xf32>
    tpu.vector_store %arg8[%c0_68, %c5, %c0_69], %130 {strides = array<i32>} : memref<1x32x32xf32, #tpu.memory_space<vmem>>, vector<1x1x32xf32>,
    %131 = vector.extract_strided_slice %50 {offsets = [0, 13, 0], sizes = [1, 1, 32], strides = [1, 1, 1]} : vector<1x16x32xf32> to vector<1x1x32xf32>
    %132 = vector.shape_cast %131 : vector<1x1x32xf32> to vector<1x32xf32>
    %c0_70 = arith.constant 0 : index
    %c24 = arith.constant 24 : index
    %c0_71 = arith.constant 0 : index
    %133 = vector.load %arg8[%c0_70, %c24, %c0_71] : memref<1x32x32xf32, #tpu.memory_space<vmem>>, vector<1x1x32xf32>
    %134 = vector.shape_cast %133 : vector<1x1x32xf32> to vector<1x32xf32>
    %135 = vector.shape_cast %132 : vector<1x32xf32> to vector<1x1x32xf32>
    tpu.vector_store %arg8[%c0_70, %c24, %c0_71], %135 {strides = array<i32>} : memref<1x32x32xf32, #tpu.memory_space<vmem>>, vector<1x1x32xf32>,
    %136 = vector.extract_strided_slice %50 {offsets = [0, 3, 0], sizes = [1, 1, 32], strides = [1, 1, 1]} : vector<1x16x32xf32> to vector<1x1x32xf32>
    %137 = vector.shape_cast %136 : vector<1x1x32xf32> to vector<1x32xf32>
    %c0_72 = arith.constant 0 : index
    %c4_73 = arith.constant 4 : index
    %c0_74 = arith.constant 0 : index
    %138 = vector.load %arg8[%c0_72, %c4_73, %c0_74] : memref<1x32x32xf32, #tpu.memory_space<vmem>>, vector<1x1x32xf32>
    %139 = vector.shape_cast %138 : vector<1x1x32xf32> to vector<1x32xf32>
    %140 = vector.shape_cast %137 : vector<1x32xf32> to vector<1x1x32xf32>
    tpu.vector_store %arg8[%c0_72, %c4_73, %c0_74], %140 {strides = array<i32>} : memref<1x32x32xf32, #tpu.memory_space<vmem>>, vector<1x1x32xf32>,
    %141 = vector.extract_strided_slice %50 {offsets = [0, 12, 0], sizes = [1, 1, 32], strides = [1, 1, 1]} : vector<1x16x32xf32> to vector<1x1x32xf32>
    %142 = vector.shape_cast %141 : vector<1x1x32xf32> to vector<1x32xf32>
    %c0_75 = arith.constant 0 : index
    %c25 = arith.constant 25 : index
    %c0_76 = arith.constant 0 : index
    %143 = vector.load %arg8[%c0_75, %c25, %c0_76] : memref<1x32x32xf32, #tpu.memory_space<vmem>>, vector<1x1x32xf32>
    %144 = vector.shape_cast %143 : vector<1x1x32xf32> to vector<1x32xf32>
    %145 = vector.shape_cast %142 : vector<1x32xf32> to vector<1x1x32xf32>
    tpu.vector_store %arg8[%c0_75, %c25, %c0_76], %145 {strides = array<i32>} : memref<1x32x32xf32, #tpu.memory_space<vmem>>, vector<1x1x32xf32>,
    %146 = vector.extract_strided_slice %50 {offsets = [0, 4, 0], sizes = [1, 1, 32], strides = [1, 1, 1]} : vector<1x16x32xf32> to vector<1x1x32xf32>
    %147 = vector.shape_cast %146 : vector<1x1x32xf32> to vector<1x32xf32>
    %c0_77 = arith.constant 0 : index
    %c3_78 = arith.constant 3 : index
    %c0_79 = arith.constant 0 : index
    %148 = vector.load %arg8[%c0_77, %c3_78, %c0_79] : memref<1x32x32xf32, #tpu.memory_space<vmem>>, vector<1x1x32xf32>
    %149 = vector.shape_cast %148 : vector<1x1x32xf32> to vector<1x32xf32>
    %150 = vector.shape_cast %147 : vector<1x32xf32> to vector<1x1x32xf32>
    tpu.vector_store %arg8[%c0_77, %c3_78, %c0_79], %150 {strides = array<i32>} : memref<1x32x32xf32, #tpu.memory_space<vmem>>, vector<1x1x32xf32>,
    %151 = vector.extract_strided_slice %50 {offsets = [0, 11, 0], sizes = [1, 1, 32], strides = [1, 1, 1]} : vector<1x16x32xf32> to vector<1x1x32xf32>
    %152 = vector.shape_cast %151 : vector<1x1x32xf32> to vector<1x32xf32>
    %c0_80 = arith.constant 0 : index
    %c26 = arith.constant 26 : index
    %c0_81 = arith.constant 0 : index
    %153 = vector.load %arg8[%c0_80, %c26, %c0_81] : memref<1x32x32xf32, #tpu.memory_space<vmem>>, vector<1x1x32xf32>
    %154 = vector.shape_cast %153 : vector<1x1x32xf32> to vector<1x32xf32>
    %155 = vector.shape_cast %152 : vector<1x32xf32> to vector<1x1x32xf32>
    tpu.vector_store %arg8[%c0_80, %c26, %c0_81], %155 {strides = array<i32>} : memref<1x32x32xf32, #tpu.memory_space<vmem>>, vector<1x1x32xf32>,
    %156 = vector.extract_strided_slice %50 {offsets = [0, 5, 0], sizes = [1, 1, 32], strides = [1, 1, 1]} : vector<1x16x32xf32> to vector<1x1x32xf32>
    %157 = vector.shape_cast %156 : vector<1x1x32xf32> to vector<1x32xf32>
    %c0_82 = arith.constant 0 : index
    %c2_83 = arith.constant 2 : index
    %c0_84 = arith.constant 0 : index
    %158 = vector.load %arg8[%c0_82, %c2_83, %c0_84] : memref<1x32x32xf32, #tpu.memory_space<vmem>>, vector<1x1x32xf32>
    %159 = vector.shape_cast %158 : vector<1x1x32xf32> to vector<1x32xf32>
    %160 = vector.shape_cast %157 : vector<1x32xf32> to vector<1x1x32xf32>
    tpu.vector_store %arg8[%c0_82, %c2_83, %c0_84], %160 {strides = array<i32>} : memref<1x32x32xf32, #tpu.memory_space<vmem>>, vector<1x1x32xf32>,
    %161 = vector.extract_strided_slice %50 {offsets = [0, 10, 0], sizes = [1, 1, 32], strides = [1, 1, 1]} : vector<1x16x32xf32> to vector<1x1x32xf32>
    %162 = vector.shape_cast %161 : vector<1x1x32xf32> to vector<1x32xf32>
    %c0_85 = arith.constant 0 : index
    %c27 = arith.constant 27 : index
    %c0_86 = arith.constant 0 : index
    %163 = vector.load %arg8[%c0_85, %c27, %c0_86] : memref<1x32x32xf32, #tpu.memory_space<vmem>>, vector<1x1x32xf32>
    %164 = vector.shape_cast %163 : vector<1x1x32xf32> to vector<1x32xf32>
    %165 = vector.shape_cast %162 : vector<1x32xf32> to vector<1x1x32xf32>
    tpu.vector_store %arg8[%c0_85, %c27, %c0_86], %165 {strides = array<i32>} : memref<1x32x32xf32, #tpu.memory_space<vmem>>, vector<1x1x32xf32>,
    %166 = vector.extract_strided_slice %50 {offsets = [0, 6, 0], sizes = [1, 1, 32], strides = [1, 1, 1]} : vector<1x16x32xf32> to vector<1x1x32xf32>
    %167 = vector.shape_cast %166 : vector<1x1x32xf32> to vector<1x32xf32>
    %c0_87 = arith.constant 0 : index
    %c1_88 = arith.constant 1 : index
    %c0_89 = arith.constant 0 : index
    %168 = vector.load %arg8[%c0_87, %c1_88, %c0_89] : memref<1x32x32xf32, #tpu.memory_space<vmem>>, vector<1x1x32xf32>
    %169 = vector.shape_cast %168 : vector<1x1x32xf32> to vector<1x32xf32>
    %170 = vector.shape_cast %167 : vector<1x32xf32> to vector<1x1x32xf32>
    tpu.vector_store %arg8[%c0_87, %c1_88, %c0_89], %170 {strides = array<i32>} : memref<1x32x32xf32, #tpu.memory_space<vmem>>, vector<1x1x32xf32>,
    %171 = vector.extract_strided_slice %50 {offsets = [0, 9, 0], sizes = [1, 1, 32], strides = [1, 1, 1]} : vector<1x16x32xf32> to vector<1x1x32xf32>
    %172 = vector.shape_cast %171 : vector<1x1x32xf32> to vector<1x32xf32>
    %c0_90 = arith.constant 0 : index
    %c28 = arith.constant 28 : index
    %c0_91 = arith.constant 0 : index
    %173 = vector.load %arg8[%c0_90, %c28, %c0_91] : memref<1x32x32xf32, #tpu.memory_space<vmem>>, vector<1x1x32xf32>
    %174 = vector.shape_cast %173 : vector<1x1x32xf32> to vector<1x32xf32>
    %175 = vector.shape_cast %172 : vector<1x32xf32> to vector<1x1x32xf32>
    tpu.vector_store %arg8[%c0_90, %c28, %c0_91], %175 {strides = array<i32>} : memref<1x32x32xf32, #tpu.memory_space<vmem>>, vector<1x1x32xf32>,
    %176 = vector.extract_strided_slice %50 {offsets = [0, 7, 0], sizes = [1, 1, 32], strides = [1, 1, 1]} : vector<1x16x32xf32> to vector<1x1x32xf32>
    %177 = vector.shape_cast %176 : vector<1x1x32xf32> to vector<1x32xf32>
    %c0_92 = arith.constant 0 : index
    %c0_93 = arith.constant 0 : index
    %c0_94 = arith.constant 0 : index
    %178 = vector.load %arg8[%c0_92, %c0_93, %c0_94] : memref<1x32x32xf32, #tpu.memory_space<vmem>>, vector<1x1x32xf32>
    %179 = vector.shape_cast %178 : vector<1x1x32xf32> to vector<1x32xf32>
    %180 = vector.shape_cast %177 : vector<1x32xf32> to vector<1x1x32xf32>
    tpu.vector_store %arg8[%c0_92, %c0_93, %c0_94], %180 {strides = array<i32>} : memref<1x32x32xf32, #tpu.memory_space<vmem>>, vector<1x1x32xf32>,
    %181 = vector.extract_strided_slice %50 {offsets = [0, 8, 0], sizes = [1, 1, 32], strides = [1, 1, 1]} : vector<1x16x32xf32> to vector<1x1x32xf32>
    %182 = vector.shape_cast %181 : vector<1x1x32xf32> to vector<1x32xf32>
    %c0_95 = arith.constant 0 : index
    %c29 = arith.constant 29 : index
    %c0_96 = arith.constant 0 : index
    %183 = vector.load %arg8[%c0_95, %c29, %c0_96] : memref<1x32x32xf32, #tpu.memory_space<vmem>>, vector<1x1x32xf32>
    %184 = vector.shape_cast %183 : vector<1x1x32xf32> to vector<1x32xf32>
    %185 = vector.shape_cast %182 : vector<1x32xf32> to vector<1x1x32xf32>
    tpu.vector_store %arg8[%c0_95, %c29, %c0_96], %185 {strides = array<i32>} : memref<1x32x32xf32, #tpu.memory_space<vmem>>, vector<1x1x32xf32>,
    %c0_97 = arith.constant 0 : index
    %c0_98 = arith.constant 0 : index
    %c0_99 = arith.constant 0 : index
    %186 = vector.load %arg8[%c0_97, %c0_98, %c0_99] : memref<1x32x32xf32, #tpu.memory_space<vmem>>, vector<1x16x32xf32>
    %c0_100 = arith.constant 0 : index
    %c1_101 = arith.constant 1 : index
    %c0_102 = arith.constant 0 : index
    %187 = vector.load %arg8[%c0_100, %c1_101, %c0_102] : memref<1x32x32xf32, #tpu.memory_space<vmem>>, vector<1x16x32xf32>
    %c0_103 = arith.constant 0 : index
    %c2_104 = arith.constant 2 : index
    %c0_105 = arith.constant 0 : index
    %188 = vector.load %arg8[%c0_103, %c2_104, %c0_105] : memref<1x32x32xf32, #tpu.memory_space<vmem>>, vector<1x16x32xf32>
    %c0_106 = arith.constant 0 : index
    %c3_107 = arith.constant 3 : index
    %c0_108 = arith.constant 0 : index
    %189 = vector.load %arg8[%c0_106, %c3_107, %c0_108] : memref<1x32x32xf32, #tpu.memory_space<vmem>>, vector<1x16x32xf32>
    %c0_109 = arith.constant 0 : index
    %c4_110 = arith.constant 4 : index
    %c0_111 = arith.constant 0 : index
    %190 = vector.load %arg8[%c0_109, %c4_110, %c0_111] : memref<1x32x32xf32, #tpu.memory_space<vmem>>, vector<1x16x32xf32>
    %c0_112 = arith.constant 0 : index
    %c5_113 = arith.constant 5 : index
    %c0_114 = arith.constant 0 : index
    %191 = vector.load %arg8[%c0_112, %c5_113, %c0_114] : memref<1x32x32xf32, #tpu.memory_space<vmem>>, vector<1x16x32xf32>
    %c0_115 = arith.constant 0 : index
    %c6_116 = arith.constant 6 : index
    %c0_117 = arith.constant 0 : index
    %192 = vector.load %arg8[%c0_115, %c6_116, %c0_117] : memref<1x32x32xf32, #tpu.memory_space<vmem>>, vector<1x16x32xf32>
    %c0_118 = arith.constant 0 : index
    %c7_119 = arith.constant 7 : index
    %c0_120 = arith.constant 0 : index
    %193 = vector.load %arg8[%c0_118, %c7_119, %c0_120] : memref<1x32x32xf32, #tpu.memory_space<vmem>>, vector<1x16x32xf32>
    %c0_121 = arith.constant 0 : index
    %c8 = arith.constant 8 : index
    %c0_122 = arith.constant 0 : index
    %194 = vector.load %arg8[%c0_121, %c8, %c0_122] : memref<1x32x32xf32, #tpu.memory_space<vmem>>, vector<1x16x32xf32>
    %c0_123 = arith.constant 0 : index
    %c9 = arith.constant 9 : index
    %c0_124 = arith.constant 0 : index
    %195 = vector.load %arg8[%c0_123, %c9, %c0_124] : memref<1x32x32xf32, #tpu.memory_space<vmem>>, vector<1x16x32xf32>
    %c0_125 = arith.constant 0 : index
    %c10 = arith.constant 10 : index
    %c0_126 = arith.constant 0 : index
    %196 = vector.load %arg8[%c0_125, %c10, %c0_126] : memref<1x32x32xf32, #tpu.memory_space<vmem>>, vector<1x16x32xf32>
    %c0_127 = arith.constant 0 : index
    %c11 = arith.constant 11 : index
    %c0_128 = arith.constant 0 : index
    %197 = vector.load %arg8[%c0_127, %c11, %c0_128] : memref<1x32x32xf32, #tpu.memory_space<vmem>>, vector<1x16x32xf32>
    %c0_129 = arith.constant 0 : index
    %c12 = arith.constant 12 : index
    %c0_130 = arith.constant 0 : index
    %198 = vector.load %arg8[%c0_129, %c12, %c0_130] : memref<1x32x32xf32, #tpu.memory_space<vmem>>, vector<1x16x32xf32>
    %c0_131 = arith.constant 0 : index
    %c13 = arith.constant 13 : index
    %c0_132 = arith.constant 0 : index
    %199 = vector.load %arg8[%c0_131, %c13, %c0_132] : memref<1x32x32xf32, #tpu.memory_space<vmem>>, vector<1x16x32xf32>
    %c0_133 = arith.constant 0 : index
    %c14 = arith.constant 14 : index
    %c0_134 = arith.constant 0 : index
    %200 = vector.load %arg8[%c0_133, %c14, %c0_134] : memref<1x32x32xf32, #tpu.memory_space<vmem>>, vector<1x16x32xf32>
    %201 = tpu.concatenate %186, %187, %188, %189, %190, %191, %192, %193, %194, %195, %196, %197, %198, %199, %200 in 2 : vector<1x16x32xf32>, vector<1x16x32xf32>, vector<1x16x32xf32>, vector<1x16x32xf32>, vector<1x16x32xf32>, vector<1x16x32xf32>, vector<1x16x32xf32>, vector<1x16x32xf32>, vector<1x16x32xf32>, vector<1x16x32xf32>, vector<1x16x32xf32>, vector<1x16x32xf32>, vector<1x16x32xf32>, vector<1x16x32xf32>, vector<1x16x32xf32> -> vector<1x16x480xf32>
    %202 = vector.shape_cast %201 : vector<1x16x480xf32> to vector<16x480xf32>
    %203 = arith.truncf %202 : vector<16x480xf32> to vector<16x480xbf16>
    %c0_135 = arith.constant 0 : index
    %c0_136 = arith.constant 0 : index
    %204 = vector.load %arg4[%c0_135, %c0_136] : memref<480x32xbf16, #tpu.memory_space<vmem>>, vector<480x32xbf16>
    %cst_137 = arith.constant dense<0.000000e+00> : vector<16x32xf32>
    %205 = tpu.matmul %203, %204, %cst_137 {dimension_numbers = #tpu.dot_dimension_numbers<[1], [0], [0], [1], [0, 0, 1, 1], [], []>} : vector<16x480xbf16>, vector<480x32xbf16>, vector<16x32xf32> -> vector<16x32xf32>
    %206 = vector.shape_cast %205 : vector<16x32xf32> to vector<1x16x32xf32>
    %c0_138 = arith.constant 0 : index
    %c0_139 = arith.constant 0 : index
    %207 = vector.load %arg5[%c0_138, %c0_139] : memref<1x32xf32, #tpu.memory_space<vmem>>, vector<1x32xf32>
    %208 = vector.shape_cast %207 : vector<1x32xf32> to vector<1x1x32xf32>
    %209 = vector.broadcast %208 : vector<1x1x32xf32> to vector<1x16x32xf32>
    %210 = arith.addf %206, %209 : vector<1x16x32xf32>
    %211 = vector.shape_cast %210 : vector<1x16x32xf32> to vector<16x32xf32>
    %c0_140 = arith.constant 0 : index
    %c4_141 = arith.constant 4 : index
    %c0_142 = arith.constant 0 : index
    %212 = vector.load %arg8[%c0_140, %c4_141, %c0_142] : memref<1x32x32xf32, #tpu.memory_space<vmem>>, vector<1x16x32xf32>
    %213 = vector.shape_cast %212 : vector<1x16x32xf32> to vector<16x32xf32>
    %214 = vector.shape_cast %211 : vector<16x32xf32> to vector<1x16x32xf32>
    tpu.vector_store %arg8[%c0_140, %c4_141, %c0_142], %214 {strides = array<i32>} : memref<1x32x32xf32, #tpu.memory_space<vmem>>, vector<1x16x32xf32>,
    %215 = vector.extract_strided_slice %210 {offsets = [0, 1, 0], sizes = [1, 1, 32], strides = [1, 1, 1]} : vector<1x16x32xf32> to vector<1x1x32xf32>
    %216 = vector.shape_cast %215 : vector<1x1x32xf32> to vector<1x32xf32>
    %c0_143 = arith.constant 0 : index
    %c3_144 = arith.constant 3 : index
    %c0_145 = arith.constant 0 : index
    %217 = vector.load %arg8[%c0_143, %c3_144, %c0_145] : memref<1x32x32xf32, #tpu.memory_space<vmem>>, vector<1x1x32xf32>
    %218 = vector.shape_cast %217 : vector<1x1x32xf32> to vector<1x32xf32>
    %219 = vector.shape_cast %216 : vector<1x32xf32> to vector<1x1x32xf32>
    tpu.vector_store %arg8[%c0_143, %c3_144, %c0_145], %219 {strides = array<i32>} : memref<1x32x32xf32, #tpu.memory_space<vmem>>, vector<1x1x32xf32>,
    %220 = vector.extract_strided_slice %210 {offsets = [0, 14, 0], sizes = [1, 1, 32], strides = [1, 1, 1]} : vector<1x16x32xf32> to vector<1x1x32xf32>
    %221 = vector.shape_cast %220 : vector<1x1x32xf32> to vector<1x32xf32>
    %c0_146 = arith.constant 0 : index
    %c20 = arith.constant 20 : index
    %c0_147 = arith.constant 0 : index
    %222 = vector.load %arg8[%c0_146, %c20, %c0_147] : memref<1x32x32xf32, #tpu.memory_space<vmem>>, vector<1x1x32xf32>
    %223 = vector.shape_cast %222 : vector<1x1x32xf32> to vector<1x32xf32>
    %224 = vector.shape_cast %221 : vector<1x32xf32> to vector<1x1x32xf32>
    tpu.vector_store %arg8[%c0_146, %c20, %c0_147], %224 {strides = array<i32>} : memref<1x32x32xf32, #tpu.memory_space<vmem>>, vector<1x1x32xf32>,
    %225 = vector.extract_strided_slice %210 {offsets = [0, 2, 0], sizes = [1, 1, 32], strides = [1, 1, 1]} : vector<1x16x32xf32> to vector<1x1x32xf32>
    %226 = vector.shape_cast %225 : vector<1x1x32xf32> to vector<1x32xf32>
    %c0_148 = arith.constant 0 : index
    %c2_149 = arith.constant 2 : index
    %c0_150 = arith.constant 0 : index
    %227 = vector.load %arg8[%c0_148, %c2_149, %c0_150] : memref<1x32x32xf32, #tpu.memory_space<vmem>>, vector<1x1x32xf32>
    %228 = vector.shape_cast %227 : vector<1x1x32xf32> to vector<1x32xf32>
    %229 = vector.shape_cast %226 : vector<1x32xf32> to vector<1x1x32xf32>
    tpu.vector_store %arg8[%c0_148, %c2_149, %c0_150], %229 {strides = array<i32>} : memref<1x32x32xf32, #tpu.memory_space<vmem>>, vector<1x1x32xf32>,
    %230 = vector.extract_strided_slice %210 {offsets = [0, 13, 0], sizes = [1, 1, 32], strides = [1, 1, 1]} : vector<1x16x32xf32> to vector<1x1x32xf32>
    %231 = vector.shape_cast %230 : vector<1x1x32xf32> to vector<1x32xf32>
    %c0_151 = arith.constant 0 : index
    %c21 = arith.constant 21 : index
    %c0_152 = arith.constant 0 : index
    %232 = vector.load %arg8[%c0_151, %c21, %c0_152] : memref<1x32x32xf32, #tpu.memory_space<vmem>>, vector<1x1x32xf32>
    %233 = vector.shape_cast %232 : vector<1x1x32xf32> to vector<1x32xf32>
    %234 = vector.shape_cast %231 : vector<1x32xf32> to vector<1x1x32xf32>
    tpu.vector_store %arg8[%c0_151, %c21, %c0_152], %234 {strides = array<i32>} : memref<1x32x32xf32, #tpu.memory_space<vmem>>, vector<1x1x32xf32>,
    %235 = vector.extract_strided_slice %210 {offsets = [0, 3, 0], sizes = [1, 1, 32], strides = [1, 1, 1]} : vector<1x16x32xf32> to vector<1x1x32xf32>
    %236 = vector.shape_cast %235 : vector<1x1x32xf32> to vector<1x32xf32>
    %c0_153 = arith.constant 0 : index
    %c1_154 = arith.constant 1 : index
    %c0_155 = arith.constant 0 : index
    %237 = vector.load %arg8[%c0_153, %c1_154, %c0_155] : memref<1x32x32xf32, #tpu.memory_space<vmem>>, vector<1x1x32xf32>
    %238 = vector.shape_cast %237 : vector<1x1x32xf32> to vector<1x32xf32>
    %239 = vector.shape_cast %236 : vector<1x32xf32> to vector<1x1x32xf32>
    tpu.vector_store %arg8[%c0_153, %c1_154, %c0_155], %239 {strides = array<i32>} : memref<1x32x32xf32, #tpu.memory_space<vmem>>, vector<1x1x32xf32>,
    %240 = vector.extract_strided_slice %210 {offsets = [0, 12, 0], sizes = [1, 1, 32], strides = [1, 1, 1]} : vector<1x16x32xf32> to vector<1x1x32xf32>
    %241 = vector.shape_cast %240 : vector<1x1x32xf32> to vector<1x32xf32>
    %c0_156 = arith.constant 0 : index
    %c22 = arith.constant 22 : index
    %c0_157 = arith.constant 0 : index
    %242 = vector.load %arg8[%c0_156, %c22, %c0_157] : memref<1x32x32xf32, #tpu.memory_space<vmem>>, vector<1x1x32xf32>
    %243 = vector.shape_cast %242 : vector<1x1x32xf32> to vector<1x32xf32>
    %244 = vector.shape_cast %241 : vector<1x32xf32> to vector<1x1x32xf32>
    tpu.vector_store %arg8[%c0_156, %c22, %c0_157], %244 {strides = array<i32>} : memref<1x32x32xf32, #tpu.memory_space<vmem>>, vector<1x1x32xf32>,
    %245 = vector.extract_strided_slice %210 {offsets = [0, 4, 0], sizes = [1, 1, 32], strides = [1, 1, 1]} : vector<1x16x32xf32> to vector<1x1x32xf32>
    %246 = vector.shape_cast %245 : vector<1x1x32xf32> to vector<1x32xf32>
    %c0_158 = arith.constant 0 : index
    %c0_159 = arith.constant 0 : index
    %c0_160 = arith.constant 0 : index
    %247 = vector.load %arg8[%c0_158, %c0_159, %c0_160] : memref<1x32x32xf32, #tpu.memory_space<vmem>>, vector<1x1x32xf32>
    %248 = vector.shape_cast %247 : vector<1x1x32xf32> to vector<1x32xf32>
    %249 = vector.shape_cast %246 : vector<1x32xf32> to vector<1x1x32xf32>
    tpu.vector_store %arg8[%c0_158, %c0_159, %c0_160], %249 {strides = array<i32>} : memref<1x32x32xf32, #tpu.memory_space<vmem>>, vector<1x1x32xf32>,
    %250 = vector.extract_strided_slice %210 {offsets = [0, 11, 0], sizes = [1, 1, 32], strides = [1, 1, 1]} : vector<1x16x32xf32> to vector<1x1x32xf32>
    %251 = vector.shape_cast %250 : vector<1x1x32xf32> to vector<1x32xf32>
    %c0_161 = arith.constant 0 : index
    %c23_162 = arith.constant 23 : index
    %c0_163 = arith.constant 0 : index
    %252 = vector.load %arg8[%c0_161, %c23_162, %c0_163] : memref<1x32x32xf32, #tpu.memory_space<vmem>>, vector<1x1x32xf32>
    %253 = vector.shape_cast %252 : vector<1x1x32xf32> to vector<1x32xf32>
    %254 = vector.shape_cast %251 : vector<1x32xf32> to vector<1x1x32xf32>
    tpu.vector_store %arg8[%c0_161, %c23_162, %c0_163], %254 {strides = array<i32>} : memref<1x32x32xf32, #tpu.memory_space<vmem>>, vector<1x1x32xf32>,
    %c0_164 = arith.constant 0 : index
    %c0_165 = arith.constant 0 : index
    %c0_166 = arith.constant 0 : index
    %255 = vector.load %arg8[%c0_164, %c0_165, %c0_166] : memref<1x32x32xf32, #tpu.memory_space<vmem>>, vector<1x16x32xf32>
    %c0_167 = arith.constant 0 : index
    %c1_168 = arith.constant 1 : index
    %c0_169 = arith.constant 0 : index
    %256 = vector.load %arg8[%c0_167, %c1_168, %c0_169] : memref<1x32x32xf32, #tpu.memory_space<vmem>>, vector<1x16x32xf32>
    %c0_170 = arith.constant 0 : index
    %c2_171 = arith.constant 2 : index
    %c0_172 = arith.constant 0 : index
    %257 = vector.load %arg8[%c0_170, %c2_171, %c0_172] : memref<1x32x32xf32, #tpu.memory_space<vmem>>, vector<1x16x32xf32>
    %c0_173 = arith.constant 0 : index
    %c3_174 = arith.constant 3 : index
    %c0_175 = arith.constant 0 : index
    %258 = vector.load %arg8[%c0_173, %c3_174, %c0_175] : memref<1x32x32xf32, #tpu.memory_space<vmem>>, vector<1x16x32xf32>
    %c0_176 = arith.constant 0 : index
    %c4_177 = arith.constant 4 : index
    %c0_178 = arith.constant 0 : index
    %259 = vector.load %arg8[%c0_176, %c4_177, %c0_178] : memref<1x32x32xf32, #tpu.memory_space<vmem>>, vector<1x16x32xf32>
    %c0_179 = arith.constant 0 : index
    %c5_180 = arith.constant 5 : index
    %c0_181 = arith.constant 0 : index
    %260 = vector.load %arg8[%c0_179, %c5_180, %c0_181] : memref<1x32x32xf32, #tpu.memory_space<vmem>>, vector<1x16x32xf32>
    %c0_182 = arith.constant 0 : index
    %c6_183 = arith.constant 6 : index
    %c0_184 = arith.constant 0 : index
    %261 = vector.load %arg8[%c0_182, %c6_183, %c0_184] : memref<1x32x32xf32, #tpu.memory_space<vmem>>, vector<1x16x32xf32>
    %c0_185 = arith.constant 0 : index
    %c7_186 = arith.constant 7 : index
    %c0_187 = arith.constant 0 : index
    %262 = vector.load %arg8[%c0_185, %c7_186, %c0_187] : memref<1x32x32xf32, #tpu.memory_space<vmem>>, vector<1x16x32xf32>
    %c0_188 = arith.constant 0 : index
    %c8_189 = arith.constant 8 : index
    %c0_190 = arith.constant 0 : index
    %263 = vector.load %arg8[%c0_188, %c8_189, %c0_190] : memref<1x32x32xf32, #tpu.memory_space<vmem>>, vector<1x16x32xf32>
    %264 = tpu.concatenate %255, %256, %257, %258, %259, %260, %261, %262, %263 in 2 : vector<1x16x32xf32>, vector<1x16x32xf32>, vector<1x16x32xf32>, vector<1x16x32xf32>, vector<1x16x32xf32>, vector<1x16x32xf32>, vector<1x16x32xf32>, vector<1x16x32xf32>, vector<1x16x32xf32> -> vector<1x16x288xf32>
    %265 = vector.shape_cast %264 : vector<1x16x288xf32> to vector<16x288xf32>
    %266 = arith.truncf %265 : vector<16x288xf32> to vector<16x288xbf16>
    %c0_191 = arith.constant 0 : index
    %c0_192 = arith.constant 0 : index
    %267 = vector.load %arg6[%c0_191, %c0_192] : memref<288x32xbf16, #tpu.memory_space<vmem>>, vector<288x32xbf16>
    %cst_193 = arith.constant dense<0.000000e+00> : vector<16x32xf32>
    %268 = tpu.matmul %266, %267, %cst_193 {dimension_numbers = #tpu.dot_dimension_numbers<[1], [0], [0], [1], [0, 0, 1, 1], [], []>} : vector<16x288xbf16>, vector<288x32xbf16>, vector<16x32xf32> -> vector<16x32xf32>
    %269 = vector.shape_cast %268 : vector<16x32xf32> to vector<1x16x32xf32>
    %cst_194 = arith.constant dense<0.000000e+00> : vector<1x32xf32>
    %270 = vector.multi_reduction <add>, %269, %cst_194 [1] : vector<1x16x32xf32> to vector<1x32xf32>
    %271 = vector.shape_cast %270 : vector<1x32xf32> to vector<1x1x32xf32>
    %cst_195 = arith.constant 1.600000e+01 : f32
    %272 = vector.broadcast %cst_195 : f32 to vector<1x1x32xf32>
    %273 = arith.divf %271, %272 : vector<1x1x32xf32>
    %274 = arith.mulf %269, %269 : vector<1x16x32xf32>
    %cst_196 = arith.constant dense<0.000000e+00> : vector<1x32xf32>
    %275 = vector.multi_reduction <add>, %274, %cst_196 [1] : vector<1x16x32xf32> to vector<1x32xf32>
    %276 = vector.shape_cast %275 : vector<1x32xf32> to vector<1x1x32xf32>
    %cst_197 = arith.constant 1.600000e+01 : f32
    %277 = vector.broadcast %cst_197 : f32 to vector<1x1x32xf32>
    %278 = arith.divf %276, %277 : vector<1x1x32xf32>
    %279 = arith.mulf %273, %273 : vector<1x1x32xf32>
    %280 = arith.subf %278, %279 : vector<1x1x32xf32>
    %cst_198 = arith.constant 0.000000e+00 : f32
    %281 = vector.broadcast %cst_198 : f32 to vector<1x1x32xf32>
    %282 = arith.maximumf %280, %281 : vector<1x1x32xf32>
    %283 = vector.broadcast %273 : vector<1x1x32xf32> to vector<1x16x32xf32>
    %284 = arith.subf %269, %283 : vector<1x16x32xf32>
    %cst_199 = arith.constant 1.000000e-03 : f32
    %285 = vector.broadcast %cst_199 : f32 to vector<1x1x32xf32>
    %286 = arith.addf %282, %285 : vector<1x1x32xf32>
    %287 = math.rsqrt %286 : vector<1x1x32xf32>
    %288 = vector.broadcast %287 : vector<1x1x32xf32> to vector<1x16x32xf32>
    %289 = arith.mulf %284, %288 : vector<1x16x32xf32>
    %290 = arith.negf %289 : vector<1x16x32xf32>
    %291 = math.exp %290 : vector<1x16x32xf32>
    %cst_200 = arith.constant 1.000000e+00 : f32
    %292 = vector.broadcast %cst_200 : f32 to vector<1x16x32xf32>
    %293 = arith.addf %292, %291 : vector<1x16x32xf32>
    %294 = arith.divf %292, %293 : vector<1x16x32xf32>
    %295 = arith.mulf %289, %294 : vector<1x16x32xf32>
    %cst_201 = arith.constant 0xFF800000 : f32
    %296 = vector.broadcast %cst_201 : f32 to vector<1x32xf32>
    %297 = vector.shape_cast %295 : vector<1x16x32xf32> to vector<16x32xf32>
    %c0_202 = arith.constant 0 : index
    %c1_203 = arith.constant 1 : index
    %c0_204 = arith.constant 0 : index
    %298 = vector.load %arg8[%c0_202, %c1_203, %c0_204] : memref<1x32x32xf32, #tpu.memory_space<vmem>>, vector<1x16x32xf32>
    %299 = vector.shape_cast %298 : vector<1x16x32xf32> to vector<16x32xf32>
    %300 = vector.shape_cast %297 : vector<16x32xf32> to vector<1x16x32xf32>
    tpu.vector_store %arg8[%c0_202, %c1_203, %c0_204], %300 {strides = array<i32>} : memref<1x32x32xf32, #tpu.memory_space<vmem>>, vector<1x16x32xf32>,
    %c0_205 = arith.constant 0 : index
    %c0_206 = arith.constant 0 : index
    %c0_207 = arith.constant 0 : index
    %301 = vector.load %arg8[%c0_205, %c0_206, %c0_207] : memref<1x32x32xf32, #tpu.memory_space<vmem>>, vector<1x1x32xf32>
    %302 = vector.shape_cast %301 : vector<1x1x32xf32> to vector<1x32xf32>
    %303 = vector.shape_cast %296 : vector<1x32xf32> to vector<1x1x32xf32>
    tpu.vector_store %arg8[%c0_205, %c0_206, %c0_207], %303 {strides = array<i32>} : memref<1x32x32xf32, #tpu.memory_space<vmem>>, vector<1x1x32xf32>,
    %c0_208 = arith.constant 0 : index
    %c17_209 = arith.constant 17 : index
    %c0_210 = arith.constant 0 : index
    %304 = vector.load %arg8[%c0_208, %c17_209, %c0_210] : memref<1x32x32xf32, #tpu.memory_space<vmem>>, vector<1x1x32xf32>
    %305 = vector.shape_cast %304 : vector<1x1x32xf32> to vector<1x32xf32>
    %306 = vector.shape_cast %296 : vector<1x32xf32> to vector<1x1x32xf32>
    tpu.vector_store %arg8[%c0_208, %c17_209, %c0_210], %306 {strides = array<i32>} : memref<1x32x32xf32, #tpu.memory_space<vmem>>, vector<1x1x32xf32>,
    %c0_211 = arith.constant 0 : index
    %c0_212 = arith.constant 0 : index
    %c0_213 = arith.constant 0 : index
    %307 = vector.load %arg8[%c0_211, %c0_212, %c0_213] : memref<1x32x32xf32, #tpu.memory_space<vmem>>, vector<1x16x32xf32>
    %c0_214 = arith.constant 0 : index
    %c2_215 = arith.constant 2 : index
    %c0_216 = arith.constant 0 : index
    %308 = vector.load %arg8[%c0_214, %c2_215, %c0_216] : memref<1x32x32xf32, #tpu.memory_space<vmem>>, vector<1x16x32xf32>
    %309 = arith.maximumf %307, %308 : vector<1x16x32xf32>
    %310 = arith.maximumf %295, %309 : vector<1x16x32xf32>
    %cst_217 = arith.constant 0xFF800000 : f32
    %311 = vector.broadcast %cst_217 : f32 to vector<2x32xf32>
    %312 = vector.shape_cast %295 : vector<1x16x32xf32> to vector<16x32xf32>
    %c0_218 = arith.constant 0 : index
    %c2_219 = arith.constant 2 : index
    %c0_220 = arith.constant 0 : index
    %313 = vector.load %arg8[%c0_218, %c2_219, %c0_220] : memref<1x32x32xf32, #tpu.memory_space<vmem>>, vector<1x16x32xf32>
    %314 = vector.shape_cast %313 : vector<1x16x32xf32> to vector<16x32xf32>
    %315 = vector.shape_cast %312 : vector<16x32xf32> to vector<1x16x32xf32>
    tpu.vector_store %arg8[%c0_218, %c2_219, %c0_220], %315 {strides = array<i32>} : memref<1x32x32xf32, #tpu.memory_space<vmem>>, vector<1x16x32xf32>,
    %c0_221 = arith.constant 0 : index
    %c0_222 = arith.constant 0 : index
    %c0_223 = arith.constant 0 : index
    %316 = vector.load %arg8[%c0_221, %c0_222, %c0_223] : memref<1x32x32xf32, #tpu.memory_space<vmem>>, vector<1x2x32xf32>
    %317 = vector.shape_cast %316 : vector<1x2x32xf32> to vector<2x32xf32>
    %318 = vector.shape_cast %311 : vector<2x32xf32> to vector<1x2x32xf32>
    tpu.vector_store %arg8[%c0_221, %c0_222, %c0_223], %318 {strides = array<i32>} : memref<1x32x32xf32, #tpu.memory_space<vmem>>, vector<1x2x32xf32>,
    %c0_224 = arith.constant 0 : index
    %c18_225 = arith.constant 18 : index
    %c0_226 = arith.constant 0 : index
    %319 = vector.load %arg8[%c0_224, %c18_225, %c0_226] : memref<1x32x32xf32, #tpu.memory_space<vmem>>, vector<1x2x32xf32>
    %320 = vector.shape_cast %319 : vector<1x2x32xf32> to vector<2x32xf32>
    %321 = vector.shape_cast %311 : vector<2x32xf32> to vector<1x2x32xf32>
    tpu.vector_store %arg8[%c0_224, %c18_225, %c0_226], %321 {strides = array<i32>} : memref<1x32x32xf32, #tpu.memory_space<vmem>>, vector<1x2x32xf32>,
    %c0_227 = arith.constant 0 : index
    %c1_228 = arith.constant 1 : index
    %c0_229 = arith.constant 0 : index
    %322 = vector.load %arg8[%c0_227, %c1_228, %c0_229] : memref<1x32x32xf32, #tpu.memory_space<vmem>>, vector<1x16x32xf32>
    %c0_230 = arith.constant 0 : index
    %c3_231 = arith.constant 3 : index
    %c0_232 = arith.constant 0 : index
    %323 = vector.load %arg8[%c0_230, %c3_231, %c0_232] : memref<1x32x32xf32, #tpu.memory_space<vmem>>, vector<1x16x32xf32>
    %324 = arith.maximumf %322, %323 : vector<1x16x32xf32>
    %325 = arith.maximumf %295, %324 : vector<1x16x32xf32>
    %c0_233 = arith.constant 0 : index
    %c0_234 = arith.constant 0 : index
    %c0_235 = arith.constant 0 : index
    %326 = vector.load %arg8[%c0_233, %c0_234, %c0_235] : memref<1x32x32xf32, #tpu.memory_space<vmem>>, vector<1x16x32xf32>
    %c0_236 = arith.constant 0 : index
    %c4_237 = arith.constant 4 : index
    %c0_238 = arith.constant 0 : index
    %327 = vector.load %arg8[%c0_236, %c4_237, %c0_238] : memref<1x32x32xf32, #tpu.memory_space<vmem>>, vector<1x16x32xf32>
    %328 = arith.maximumf %326, %327 : vector<1x16x32xf32>
    %329 = arith.maximumf %325, %328 : vector<1x16x32xf32>
    %330 = tpu.iota {dimensions = array<i32: 2>} : vector<1x16x32xi32>
    %c16_i32 = arith.constant 16 : i32
    %331 = vector.broadcast %c16_i32 : i32 to vector<1x16x32xi32>
    %332 = arith.cmpi slt, %330, %331 : vector<1x16x32xi32>
    %333 = arith.select %332, %310, %329 : vector<1x16x32xi1>, vector<1x16x32xf32>
    %cst_239 = arith.constant 0.000000e+00 : f32
    %334 = vector.broadcast %cst_239 : f32 to vector<1x16x32xf32>
    %335 = arith.cmpf ogt, %333, %334 : vector<1x16x32xf32>
    %cst_240 = arith.constant 2.000000e-01 : f32
    %336 = vector.broadcast %cst_240 : f32 to vector<1x16x32xf32>
    %337 = arith.mulf %336, %333 : vector<1x16x32xf32>
    %338 = arith.select %335, %333, %337 : vector<1x16x32xi1>, vector<1x16x32xf32>
    %cst_241 = arith.constant 0.000000e+00 : f32
    %339 = vector.broadcast %cst_241 : f32 to vector<1x16x32xf32>
    %340 = arith.cmpf ogt, %111, %339 : vector<1x16x32xf32>
    %cst_242 = arith.constant 2.000000e-01 : f32
    %341 = vector.broadcast %cst_242 : f32 to vector<1x16x32xf32>
    %342 = arith.mulf %341, %111 : vector<1x16x32xf32>
    %343 = arith.select %340, %111, %342 : vector<1x16x32xi1>, vector<1x16x32xf32>
    %344 = arith.addf %338, %343 : vector<1x16x32xf32>
    %345 = arith.addf %344, %1 : vector<1x16x32xf32>
    %346 = tpu.transpose %345, [0, 2, 1] : vector<1x16x32xf32> -> vector<1x32x16xf32>
    %c0_243 = arith.constant 0 : index
    %c0_244 = arith.constant 0 : index
    %c0_245 = arith.constant 0 : index
    %347 = vector.load %arg7[%c0_243, %c0_244, %c0_245] : memref<1x32x16xf32, #tpu.memory_space<vmem>>, vector<1x32x16xf32>
    tpu.vector_store %arg7[%c0_243, %c0_244, %c0_245], %346 {strides = array<i32>} : memref<1x32x16xf32, #tpu.memory_space<vmem>>, vector<1x32x16xf32>,
    return
  }
  func.func @transform_0(%arg0: i32) -> (i32, i32, i32) {
    %c0_i32 = arith.constant 0 : i32
    %c0_i32_0 = arith.constant 0 : i32
    %c0_i32_1 = arith.constant 0 : i32
    return %arg0, %c0_i32, %c0_i32_0 : i32, i32, i32
  }
  func.func @transform_1(%arg0: i32) -> (i32, i32) {
    %c0_i32 = arith.constant 0 : i32
    %c0_i32_0 = arith.constant 0 : i32
    %c0_i32_1 = arith.constant 0 : i32
    return %c0_i32, %c0_i32_0 : i32, i32
  }
  func.func @transform_2(%arg0: i32) -> (i32, i32) {
    %c0_i32 = arith.constant 0 : i32
    %c0_i32_0 = arith.constant 0 : i32
    %c0_i32_1 = arith.constant 0 : i32
    return %c0_i32, %c0_i32_0 : i32, i32
  }
  func.func @transform_3(%arg0: i32) -> (i32, i32) {
    %c0_i32 = arith.constant 0 : i32
    %c0_i32_0 = arith.constant 0 : i32
    %c0_i32_1 = arith.constant 0 : i32
    return %c0_i32, %c0_i32_0 : i32, i32
  }
  func.func @transform_4(%arg0: i32) -> (i32, i32) {
    %c0_i32 = arith.constant 0 : i32
    %c0_i32_0 = arith.constant 0 : i32
    %c0_i32_1 = arith.constant 0 : i32
    return %c0_i32, %c0_i32_0 : i32, i32
  }
  func.func @transform_5(%arg0: i32) -> (i32, i32) {
    %c0_i32 = arith.constant 0 : i32
    %c0_i32_0 = arith.constant 0 : i32
    %c0_i32_1 = arith.constant 0 : i32
    return %c0_i32, %c0_i32_0 : i32, i32
  }
  func.func @transform_6(%arg0: i32) -> (i32, i32, i32) {
    %c0_i32 = arith.constant 0 : i32
    %c0_i32_0 = arith.constant 0 : i32
    %c0_i32_1 = arith.constant 0 : i32
    return %arg0, %c0_i32, %c0_i32_0 : i32, i32, i32
  }
}

</mosaic_0001>

<llo_original>
// kernel: _lambda_.1
$region0: #{_lambda_.1}
  #allocation0 [shape = 'u32[]', space=smem, size = 0x4, offset = 0x4, fixed_abs, tag = 'smem constant byte address 0x4 - core index']
  #allocation1 [shape = 'u32[144,128]{1,0:T(1,128)}', space=vmem, size = 0x12000, scoped, tag = 'internal scratch']
  #allocation2 [shape = 'f32[1,32,32]{2,1,0:T(8,128)}', space=vmem, size = 0x4000, scoped, tag = 'scratch operand']
  %s0 = inlined_call_operand.vmem [shape: f32[2,32,16], index: 0, kind: input, shape index: {}]
  %s1 = inlined_call_operand.vmem [shape: bf16[96,32], index: 1, kind: input, shape index: {}]
  %s2 = inlined_call_operand.vmem [shape: bf16[160,32], index: 2, kind: input, shape index: {}]
  %s3 = inlined_call_operand.hbm [shape: bf16[480,32], index: 3, kind: input, shape index: {}]
  %s4 = inlined_call_operand.vmem [shape: f32[1,32], index: 4, kind: input, shape index: {}]
  %s5 = inlined_call_operand.hbm [shape: bf16[288,32], index: 5, kind: input, shape index: {}]
  %s6 = inlined_call_operand.vmem [shape: f32[2,32,16], index: 6, kind: output, shape index: {}]
  %s7 = sld [smem:[#allocation0]]
  $region65: #{_lambda_.1} parent=0
    _
  %s9 = ssub.s32 1, %s7
  %s10 = scalar_select 0, %s9, %s7
  $region1: #{_lambda_.1} parent=0
    #allocation3 [shape = 'u8[122880]{0}', space=vmem, size = 0x1e000, scoped, tag = 'input window, operand 3, single buffered']
    #allocation4 [shape = 's32[2]{0}', space=sflag, size = 0x8, scoped, tag = 'scoped memory for _lambda_.1']
    #allocation5 [shape = 'u8[73728]{0}', space=vmem, size = 0x12000, scoped, tag = 'input window, operand 5, single buffered']
    #allocation6 [shape = 's32[1]{0}', space=sflag, size = 0x4, scoped, tag = 'scoped memory for _lambda_.1']
    %11 = vsyncpa [#allocation4], 0
    %12 = vsyncpa [#allocation6], 0
    loop: start=0, step=1, limit=4
    $region2: #{_lambda_.1} parent=1 // loop_pre_header
      _
    $region3: #{_lambda_.1} parent=1 // loop_header
      %s14 = sphi 0, %s18
      %p15 = scmp.ge.s32.totalorder %s14, 4
      %s24 = sphi 0, %s26
      %s27 = sphi 0, %s24
      %s28 = sphi 0, %s27
      %s44 = sphi 0, %s28
      %s48 = sphi 0, %s48
      %s50 = sphi 0, %s48
      %s51 = sphi 0, %s50
      %s65 = sphi 0, %s51
      %s69 = sphi 0, %s69
      %s71 = sphi 0, %s69
      %s72 = sphi 0, %s71
      %s86 = sphi 0, %s72
      %s90 = sphi 0, %s90
      %s92 = sphi 0, %s90
      %s93 = sphi 0, %s92
      %s107 = sphi 0, %s93
      %s111 = sphi 0, %s111
      %s113 = sphi 0, %s111
      %s114 = sphi 0, %s113
      %s128 = sphi 0, %s114
      %s132 = sphi 0, %s132
      %s134 = sphi 0, %s132
      %s135 = sphi 0, %s134
      %s149 = sphi 0, %s135
      %s155 = sphi 0, %s157
      %s158 = sphi 0, %s155
      %s159 = sphi 0, %s158
      %s175 = sphi 0, %s159
    $region4: #{_lambda_.1} parent=1 // loop_header_branch
      %17 = sbr.rel (%p15) target = $region8
    $region5: #{_lambda_.1} parent=1 // loop_body
      %s19 = ssub.s32 %s14, 1
      %s20 = ssub.s32 %s14, 2
      %s21 = sadd.s32 %s14, 1
      %s22 = ssub.s32 %s14, %s21
      %p23 = scmp.eq.s32.totalorder %s22, 0
      %s25 = sadd.s32 %s24, 1
      %s26 = scalar_select %p23, %s24, %s25
      %p29 = pneg %p23
      %p30 = scmp.eq.s32.totalorder %s14, 1
      %p31 = por %p29, %p30
      %p32 = scmp.ne.s32.totalorder %s24, %s27
      %p33 = scmp.eq.s32.totalorder %s14, 0
      %p34 = por %p32, %p33
      %p35 = scmp.ne.s32.totalorder %s24, %s27
      %p36 = scmp.eq.s32.totalorder %s19, 1
      %p37 = por %p35, %p36
      %p38 = scmp.ne.s32.totalorder %s27, %s28
      %p39 = scmp.eq.s32.totalorder %s19, 0
      %p40 = por %p38, %p39
      %p41 = scmp.ne.s32.totalorder %s27, %s28
      %p42 = scmp.eq.s32.totalorder %s20, 1
      %p43 = por %p41, %p42
      %p45 = scmp.ne.s32.totalorder %s28, %s44
      %p46 = scmp.eq.s32.totalorder %s20, 0
      %p47 = por %p45, %p46
      %s49 = sadd.s32 %s48, 1
      %p52 = scmp.eq.s32.totalorder %s14, 1
      %p53 = scmp.ne.s32.totalorder %s48, %s50
      %p54 = scmp.eq.s32.totalorder %s14, 0
      %p55 = por %p53, %p54
      %p56 = scmp.ne.s32.totalorder %s48, %s50
      %p57 = scmp.eq.s32.totalorder %s19, 1
      %p58 = por %p56, %p57
      %p59 = scmp.ne.s32.totalorder %s50, %s51
      %p60 = scmp.eq.s32.totalorder %s19, 0
      %p61 = por %p59, %p60
      %p62 = scmp.ne.s32.totalorder %s50, %s51
      %p63 = scmp.eq.s32.totalorder %s20, 1
      %p64 = por %p62, %p63
      %p66 = scmp.ne.s32.totalorder %s51, %s65
      %p67 = scmp.eq.s32.totalorder %s20, 0
      %p68 = por %p66, %p67
      %s70 = sadd.s32 %s69, 1
      %p73 = scmp.eq.s32.totalorder %s14, 1
      %p74 = scmp.ne.s32.totalorder %s69, %s71
      %p75 = scmp.eq.s32.totalorder %s14, 0
      %p76 = por %p74, %p75
      %p77 = scmp.ne.s32.totalorder %s69, %s71
      %p78 = scmp.eq.s32.totalorder %s19, 1
      %p79 = por %p77, %p78
      %p80 = scmp.ne.s32.totalorder %s71, %s72
      %p81 = scmp.eq.s32.totalorder %s19, 0
      %p82 = por %p80, %p81
      %p83 = scmp.ne.s32.totalorder %s71, %s72
      %p84 = scmp.eq.s32.totalorder %s20, 1
      %p85 = por %p83, %p84
      %p87 = scmp.ne.s32.totalorder %s72, %s86
      %p88 = scmp.eq.s32.totalorder %s20, 0
      %p89 = por %p87, %p88
      %s91 = sadd.s32 %s90, 1
      %p94 = scmp.eq.s32.totalorder %s14, 1
      %p95 = scmp.ne.s32.totalorder %s90, %s92
      %p96 = scmp.eq.s32.totalorder %s14, 0
      %p97 = por %p95, %p96
      %p98 = scmp.ne.s32.totalorder %s90, %s92
      %p99 = scmp.eq.s32.totalorder %s19, 1
      %p100 = por %p98, %p99
      %p101 = scmp.ne.s32.totalorder %s92, %s93
      %p102 = scmp.eq.s32.totalorder %s19, 0
      %p103 = por %p101, %p102
      %p104 = scmp.ne.s32.totalorder %s92, %s93
      %p105 = scmp.eq.s32.totalorder %s20, 1
      %p106 = por %p104, %p105
      %p108 = scmp.ne.s32.totalorder %s93, %s107
      %p109 = scmp.eq.s32.totalorder %s20, 0
      %p110 = por %p108, %p109
      %s112 = sadd.s32 %s111, 1
      %p115 = scmp.eq.s32.totalorder %s14, 1
      %p116 = scmp.ne.s32.totalorder %s111, %s113
      %p117 = scmp.eq.s32.totalorder %s14, 0
      %p118 = por %p116, %p117
      %p119 = scmp.ne.s32.totalorder %s111, %s113
      %p120 = scmp.eq.s32.totalorder %s19, 1
      %p121 = por %p119, %p120
      %p122 = scmp.ne.s32.totalorder %s113, %s114
      %p123 = scmp.eq.s32.totalorder %s19, 0
      %p124 = por %p122, %p123
      %p125 = scmp.ne.s32.totalorder %s113, %s114
      %p126 = scmp.eq.s32.totalorder %s20, 1
      %p127 = por %p125, %p126
      %p129 = scmp.ne.s32.totalorder %s114, %s128
      %p130 = scmp.eq.s32.totalorder %s20, 0
      %p131 = por %p129, %p130
      %s133 = sadd.s32 %s132, 1
      %p136 = scmp.eq.s32.totalorder %s14, 1
      %p137 = scmp.ne.s32.totalorder %s132, %s134
      %p138 = scmp.eq.s32.totalorder %s14, 0
      %p139 = por %p137, %p138
      %p140 = scmp.ne.s32.totalorder %s132, %s134
      %p141 = scmp.eq.s32.totalorder %s19, 1
      %p142 = por %p140, %p141
      %p143 = scmp.ne.s32.totalorder %s134, %s135
      %p144 = scmp.eq.s32.totalorder %s19, 0
      %p145 = por %p143, %p144
      %p146 = scmp.ne.s32.totalorder %s134, %s135
      %p147 = scmp.eq.s32.totalorder %s20, 1
      %p148 = por %p146, %p147
      %p150 = scmp.ne.s32.totalorder %s135, %s149
      %p151 = scmp.eq.s32.totalorder %s20, 0
      %p152 = por %p150, %p151
      %s153 = ssub.s32 %s14, %s21
      %p154 = scmp.eq.s32.totalorder %s153, 0
      %s156 = sadd.s32 %s155, 1
      %s157 = scalar_select %p154, %s155, %s156
      %p160 = pneg %p154
      %p161 = scmp.eq.s32.totalorder %s14, 1
      %p162 = por %p160, %p161
      %p163 = scmp.ne.s32.totalorder %s155, %s158
      %p164 = scmp.eq.s32.totalorder %s14, 0
      %p165 = por %p163, %p164
      %p166 = scmp.ne.s32.totalorder %s155, %s158
      %p167 = scmp.eq.s32.totalorder %s19, 1
      %p168 = por %p166, %p167
      %p169 = scmp.ne.s32.totalorder %s158, %s159
      %p170 = scmp.eq.s32.totalorder %s19, 0
      %p171 = por %p169, %p170
      %p172 = scmp.ne.s32.totalorder %s158, %s159
      %p173 = scmp.eq.s32.totalorder %s20, 1
      %p174 = por %p172, %p173
      %p176 = scmp.ne.s32.totalorder %s159, %s175
      %p177 = scmp.eq.s32.totalorder %s20, 0
      %p178 = por %p176, %p177
      %p179 = scmp.le.s32.totalorder 1, %s14
      %p180 = scmp.lt.s32.totalorder %s14, 3
      %p181 = pnand %p179, %p180
      %p182 = pneg %p181
      // Predicated region
      $region9: #{_lambda_.1} parent=5 // pred_check
        _
      $region10: #{_lambda_.1} parent=5 // pred_check_branch
        %184 = sbr.rel (%p181) target = $region12
      $region11: #{_lambda_.1} parent=5 // pred_region
        %s185 = ssub.s32 %s14, 1
        // Predicated region
        $region13: #{_lambda_.1} parent=11 // pred_check
          %p186 = pneg %p61
        $region14: #{_lambda_.1} parent=11 // pred_check_branch
          %188 = sbr.rel (%p186) target = $region16
        $region15: #{_lambda_.1} parent=11 // pred_region
          _
        $region16: #{_lambda_.1} parent=11 // pred_fallthru
          _
        // Predicated region
        $region17: #{_lambda_.1} parent=11 // pred_check
          %p189 = pneg %p82
        $region18: #{_lambda_.1} parent=11 // pred_check_branch
          %191 = sbr.rel (%p189) target = $region20
        $region19: #{_lambda_.1} parent=11 // pred_region
          _
        $region20: #{_lambda_.1} parent=11 // pred_fallthru
          _
        // Predicated region
        $region21: #{_lambda_.1} parent=11 // pred_check
          %p192 = pneg %p103
        $region22: #{_lambda_.1} parent=11 // pred_check_branch
          %194 = sbr.rel (%p192) target = $region24
        $region23: #{_lambda_.1} parent=11 // pred_region
          %s196 = ssub.s32 3840, 3840
          %197 = vsyncadd [#allocation4], %s196
          %s198 = sshll.u32 [#allocation3], 4
          %s199 = int_to_ptr.vmem [resolvable:$true] %s198
          %204 = dma.hbm_to_vmem [thread:$0]  %s3, 3840, %s199, [#allocation4], 64, 64, 4
        $region24: #{_lambda_.1} parent=11 // pred_fallthru
          _
        // Predicated region
        $region25: #{_lambda_.1} parent=11 // pred_check
          %p205 = pneg %p124
        $region26: #{_lambda_.1} parent=11 // pred_check_branch
          %207 = sbr.rel (%p205) target = $region28
        $region27: #{_lambda_.1} parent=11 // pred_region
          _
        $region28: #{_lambda_.1} parent=11 // pred_fallthru
          _
        // Predicated region
        $region29: #{_lambda_.1} parent=11 // pred_check
          %p208 = pneg %p145
        $region30: #{_lambda_.1} parent=11 // pred_check_branch
          %210 = sbr.rel (%p208) target = $region32
        $region31: #{_lambda_.1} parent=11 // pred_region
          %s212 = ssub.s32 2304, 2304
          %213 = vsyncadd [#allocation6], %s212
          %s214 = sshll.u32 [#allocation5], 4
          %s215 = int_to_ptr.vmem [resolvable:$true] %s214
          %220 = dma.hbm_to_vmem [thread:$0]  %s5, 2304, %s215, [#allocation6], 64, 64, 4
        $region32: #{_lambda_.1} parent=11 // pred_fallthru
          _
      $region12: #{_lambda_.1} parent=5 // pred_fallthru
        _
      %p221 = scmp.lt.s32.totalorder %s14, 2
      // Predicated region
      $region33: #{_lambda_.1} parent=5 // pred_check
        %p222 = pneg %p221
      $region34: #{_lambda_.1} parent=5 // pred_check_branch
        %224 = sbr.rel (%p222) target = $region36
      $region35: #{_lambda_.1} parent=5 // pred_region
        // Predicated region
        $region37: #{_lambda_.1} parent=35 // pred_check
          %p225 = pneg %p34
        $region38: #{_lambda_.1} parent=35 // pred_check_branch
          %227 = sbr.rel (%p225) target = $region40
        $region39: #{_lambda_.1} parent=35 // pred_region
          %p228 = scmp.lt.s32.totalorder %s14, 1
          %s229 = scalar_select %p228, %s14, 1
          %s230 = smul.addr %s229, 4
          %s231 = smul.addr %s230, 8
          %s232 = scalar_lea.vmem %s0, %s231
        $region40: #{_lambda_.1} parent=35 // pred_fallthru
          _
      $region36: #{_lambda_.1} parent=5 // pred_fallthru
        _
      %p233 = scmp.le.s32.totalorder 1, %s14
      %p234 = scmp.lt.s32.totalorder %s14, 3
      %p235 = pnand %p233, %p234
      %p236 = pneg %p235
      // Predicated region
      $region41: #{_lambda_.1} parent=5 // pred_check
        _
      $region42: #{_lambda_.1} parent=5 // pred_check_branch
        %238 = sbr.rel (%p235) target = $region44
      $region43: #{_lambda_.1} parent=5 // pred_region
        %s239 = ssub.s32 %s14, 1
        // Predicated region
        $region45: #{_lambda_.1} parent=43 // pred_check
          %p240 = pneg %p103
        $region46: #{_lambda_.1} parent=43 // pred_check_branch
          %242 = sbr.rel (%p240) target = $region48
        $region47: #{_lambda_.1} parent=43 // pred_region
          %243 = dma.done [#allocation4], 3840
        $region48: #{_lambda_.1} parent=43 // pred_fallthru
          _
        // Predicated region
        $region49: #{_lambda_.1} parent=43 // pred_check
          %p244 = pneg %p145
        $region50: #{_lambda_.1} parent=43 // pred_check_branch
          %246 = sbr.rel (%p244) target = $region52
        $region51: #{_lambda_.1} parent=43 // pred_region
          %247 = dma.done [#allocation6], 2304
        $region52: #{_lambda_.1} parent=43 // pred_fallthru
          _
        %p248 = scmp.lt.s32.totalorder %s19, 1
        %s249 = scalar_select %p248, %s19, 1
        %s250 = smul.addr %s249, 4
        %s251 = smul.addr %s250, 8
        %s252 = scalar_lea.vmem %s0, %s251
        %p253 = pneg %p40
        %p254 = pneg %p37
        %p255 = pneg %p61
        %p256 = pneg %p58
        %p257 = pneg %p82
        %p258 = pneg %p79
        %p259 = pneg %p103
        %p260 = pneg %p100
        %p261 = pneg %p124
        %p262 = pneg %p121
        %p263 = pneg %p145
        %p264 = pneg %p142
        %p265 = pneg %p171
        %p266 = pneg %p168
        %p267 = scmp.lt.s32.totalorder %s19, 1
        %s268 = scalar_select %p267, %s19, 1
        %s269 = smul.addr %s268, 4
        %s270 = smul.addr %s269, 8
        %s271 = scalar_lea.vmem %s6, %s270
        %p272 = scmp.lt.s32.totalorder %s19, 1
        %s273 = scalar_select %p272, %s19, 1
        %s274 = smul.addr %s273, 4
        %s275 = smul.addr %s274, 8
        %s276 = scalar_lea.vmem %s0, %s275
        %p277 = scmp.lt.s32.totalorder %s19, 1
        %s278 = scalar_select %p277, %s19, 1
        %s279 = smul.addr %s278, 4
        %s280 = smul.addr %s279, 8
        %s281 = scalar_lea.vmem %s6, %s280
        %v283 = vld [vmem:[%s276] sm:$0xff]
        %v284 = vld [vmem:[%s276 + $0x8] sm:$0xff]
        %v285 = vld [vmem:[%s276 + $0x10] sm:$0xff]
        %v286 = vld [vmem:[%s276 + $0x18] sm:$0xff]
        %287 = vxpose.xlu0.b32.start [1/16] %v283, 128
        %288 = vxpose.xlu0.b32.cont [2/16] %v284, 128
        %289 = vxpose.xlu0.b32.cont [3/16] %v285, 128
        %290 = vxpose.xlu0.b32.cont [4/16] %v286, 128
        %291 = vxpose.xlu0.b32.cont [5/16] 0.0, 128
        %292 = vxpose.xlu0.b32.cont [6/16] 0.0, 128
        %293 = vxpose.xlu0.b32.cont [7/16] 0.0, 128
        %294 = vxpose.xlu0.b32.cont [8/16] 0.0, 128
        %295 = vxpose.xlu0.b32.cont [9/16] 0.0, 128
        %296 = vxpose.xlu0.b32.cont [10/16] 0.0, 128
        %297 = vxpose.xlu0.b32.cont [11/16] 0.0, 128
        %298 = vxpose.xlu0.b32.cont [12/16] 0.0, 128
        %299 = vxpose.xlu0.b32.cont [13/16] 0.0, 128
        %300 = vxpose.xlu0.b32.cont [14/16] 0.0, 128
        %301 = vxpose.xlu0.b32.cont [15/16] 0.0, 128
        %302 = vxpose.xlu0.b32.end [16/16] 0.0, 128
        %v303 = vpop.trf.xlu0
        %v304 = vpop.trf.xlu0
        %v305 = vpop.trf.xlu0
        %v306 = vpop.trf.xlu0
        %v307 = vpop.trf.xlu0
        %v308 = vpop.trf.xlu0
        %v309 = vpop.trf.xlu0
        %v310 = vpop.trf.xlu0
        %v311 = vpop.trf.xlu0
        %v312 = vpop.trf.xlu0
        %v313 = vpop.trf.xlu0
        %v314 = vpop.trf.xlu0
        %v315 = vpop.trf.xlu0
        %v316 = vpop.trf.xlu0
        %v317 = vpop.trf.xlu0
        %v318 = vpop.trf.xlu0
        %vm319 = vcmask 261120
        %320 = vst.msk [vmem:[#allocation2 + $0x1] sm:$0xff] %vm319, %v303
        %321 = vst.msk [vmem:[#allocation2 + $0x9] sm:$0xff] %vm319, %v304
        %vm322 = vcmask 254977
        %323 = vst.msk [vmem:[#allocation2 - $0x1] sm:$0x2] %vm322, %v303
        %vm324 = vcmask 260102
        %325 = vst.msk [vmem:[#allocation2 + $0xb] sm:$0x40] %vm324, %v304
        %v326 = vld [vmem:[#allocation2] sm:$0xff]
        %v327 = vld [vmem:[#allocation2 + $0x8] sm:$0xff]
        %v328 = vld [vmem:[#allocation2 + $0x1] sm:$0xff]
        %v329 = vld [vmem:[#allocation2 + $0x9] sm:$0xff]
        %v330 = vld [vmem:[#allocation2 + $0x2] sm:$0xff]
        %v331 = vld [vmem:[#allocation2 + $0xa] sm:$0xff]
        %334 = vrot.lane.b32.xlu0 %v328, 32
        %v335 = vpop.permute.xlu0 %334
        %336 = vrot.lane.b32.xlu0 %v329, 32
        %v337 = vpop.permute.xlu0 %336
        %342 = vrot.lane.b32.xlu0 %v330, 64
        %v343 = vpop.permute.xlu0 %342
        %344 = vrot.lane.b32.xlu0 %v331, 64
        %v345 = vpop.permute.xlu0 %344
        %v348 = vsel %vm319, %v326, %v335
        %v349 = vsel %vm319, %v327, %v337
        %vm350 = vcmask 523264
        %v351 = vsel %vm350, %v348, %v343
        %v352 = vsel %vm350, %v349, %v345
        %v353 = vpack.c.bf16 %v352, %v351
        %v354 = vld [vmem:[%s1] sm:$0xf]
        %v355 = vld [vmem:[%s1 + $0x4] sm:$0xf]
        %v356 = vld [vmem:[%s1 + $0x8] sm:$0xf]
        %v357 = vld [vmem:[%s1 + $0xc] sm:$0xf]
        %v358 = vld [vmem:[%s1 + $0x10] sm:$0xf]
        %v359 = vld [vmem:[%s1 + $0x14] sm:$0xf]
        %v360 = vld [vmem:[%s1 + $0x18] sm:$0xf]
        %v361 = vld [vmem:[%s1 + $0x1c] sm:$0xf]
        %v362 = vld [vmem:[%s1 + $0x20] sm:$0xf]
        %v363 = vld [vmem:[%s1 + $0x24] sm:$0xf]
        %v364 = vld [vmem:[%s1 + $0x28] sm:$0xf]
        %v365 = vld [vmem:[%s1 + $0x2c] sm:$0xf]
        %v378 = vunpack.c.l.b16 %v354
        %v379 = vunpack.c.l.b16 %v355
        %v380 = vunpack.c.l.b16 %v356
        %v381 = vunpack.c.l.b16 %v357
        %v382 = vunpack.c.l.b16 %v358
        %v383 = vunpack.c.l.b16 %v359
        %v384 = vunpack.c.l.b16 %v360
        %v385 = vunpack.c.l.b16 %v361
        %v386 = vunpack.c.l.b16 %v362
        %v387 = vunpack.c.l.b16 %v363
        %v388 = vunpack.c.l.b16 %v364
        %v389 = vunpack.c.l.b16 %v365
        %v390 = vpack.c.b16 %v379, %v378
        %v391 = vpack.c.b16 %v381, %v380
        %v392 = vpack.c.b16 %v383, %v382
        %v393 = vpack.c.b16 %v385, %v384
        %v394 = vpack.c.b16 %v387, %v386
        %v395 = vpack.c.b16 %v389, %v388
        %vm402 = vcmask 785408
        %v404 = vsel %vm402, %v353, 0
        %406 = vmatprep.subr.bf16.mxu0 0
        %407 = vmatpush1.bf16.msra.mxu0 %v390
        %408 = vmatprep.subr.bf16.mxu0 0
        %409 = vmatpush1.bf16.msra.mxu0 %v391
        %410 = vmatprep.subr.bf16.mxu0 0
        %411 = vmatpush1.bf16.msra.mxu0 %v392
        %412 = vmatprep.subr.bf16.mxu0 0
        %413 = vmatpush1.bf16.msra.mxu0 %v393
        %414 = vmatprep.subr.bf16.mxu0 0
        %415 = vmatpush1.bf16.msra.mxu0 %v394
        %416 = vmatprep.subr.bf16.mxu0 0
        %417 = vmatpush1.bf16.msra.mxu0 %v395
        %418 = vmatprep.subr.bf16.mxu0 0
        %419 = vmatpush1.bf16.msra.mxu0 0
        %420 = vmatprep.subr.bf16.mxu0 0
        %421 = vmatpush1.bf16.msra.mxu0 0
        %422 = vmatprep.subr.bf16.mxu0 0
        %423 = vmatpush1.bf16.msra.mxu0 0
        %424 = vmatprep.subr.bf16.mxu0 0
        %425 = vmatpush1.bf16.msra.mxu0 0
        %426 = vmatprep.subr.bf16.mxu0 0
        %427 = vmatpush1.bf16.msra.mxu0 0
        %428 = vmatprep.subr.bf16.mxu0 0
        %429 = vmatpush1.bf16.msra.mxu0 0
        %430 = vmatprep.subr.bf16.mxu0 0
        %431 = vmatpush1.bf16.msra.mxu0 0
        %432 = vmatprep.subr.bf16.mxu0 0
        %433 = vmatpush1.bf16.msra.mxu0 0
        %434 = vmatprep.subr.bf16.mxu0 0
        %435 = vmatpush1.bf16.msra.mxu0 0
        %436 = vmatprep.subr.bf16.mxu0 0
        %437 = vmatpush1.bf16.msra.mxu0 0
        %438 = vmatprep.mubr.bf16.mxu0 0
        %439 = vmatmul.mubr.bf16.gmra.mrb[0].mxu0 %v404
        %v440 = vpop.f32.mrb[0].mxu0
        %v441 = vadd.f32 0.0, %v440
        %v442 = vpop.f32.mrb[0].mxu0
        %v443 = vpop.f32.mrb[0].mxu0
        %v444 = vadd.f32 0.0, %v443
        %v445 = vpop.f32.mrb[0].mxu0
        %446 = vdwg.mxu0
        %v447 = vsel %vm319, %v441, 0.0
        %v448 = vsel %vm319, %v444, 0.0
        %v449 = vadd.f32 %v447, %v448
        %v450 = vrot.slane %v449, 4
        %v451 = vadd.f32 %v449, %v450
        %v452 = vrot.slane %v451, 2
        %v453 = vadd.f32 %v451, %v452
        %v454 = vrot.slane %v453, 1
        %v455 = vadd.f32 %v453, %v454
        %v456 = vrcp.pop 16.0
        %v457 = vmul.f32 %v455, %v456
        %v458 = vmul.f32 %v441, %v441
        %v459 = vmul.f32 %v444, %v444
        %v460 = vsel %vm319, %v458, 0.0
        %v461 = vsel %vm319, %v459, 0.0
        %v462 = vadd.f32 %v460, %v461
        %v463 = vrot.slane %v462, 4
        %v464 = vadd.f32 %v462, %v463
        %v465 = vrot.slane %v464, 2
        %v466 = vadd.f32 %v464, %v465
        %v467 = vrot.slane %v466, 1
        %v468 = vadd.f32 %v466, %v467
        %v469 = vmul.f32 %v468, %v456
        %v470 = vmul.f32 %v457, %v457
        %v471 = vsub.f32 %v469, %v470
        %v472 = vmax.f32 %v471, 0.0
        %v473 = vsub.f32 %v441, %v457
        %v474 = vsub.f32 %v444, %v457
        %v475 = vadd.f32 %v472, 0.001
        %v476 = vrsqrt.pop %v475
        %v477 = vmul.f32 %v473, %v476
        %v478 = vmul.f32 %v474, %v476
        %v479 = vxor.u32 %v477, 2147483648
        %v480 = vxor.u32 %v478, 2147483648
        %v481 = vmul.f32 %v479, 1.442695
        %v482 = vpow.pop %v481
        %v483 = vmul.f32 %v480, 1.442695
        %v484 = vpow.pop %v483
        %v485 = vadd.f32 %v482, 1.0
        %v486 = vadd.f32 %v484, 1.0
        %v487 = vrcp.pop %v485
        %v488 = vmul.f32 1.0, %v487
        %v489 = vrcp.pop %v486
        %v490 = vmul.f32 1.0, %v489
        %v491 = vmul.f32 %v477, %v488
        %v492 = vmul.f32 %v478, %v490
        %493 = vst.msk [vmem:[#allocation2 + $0x2] sm:$0xff] %vm319, %v303
        %494 = vst.msk [vmem:[#allocation2 + $0xa] sm:$0xff] %vm319, %v304
        %495 = vst.msk [vmem:[#allocation2] sm:$0x2] %vm322, %v303
        %496 = vst.msk [vmem:[#allocation2 + $0xc] sm:$0x40] %vm324, %v304
        %vm497 = vcmask 256002
        %498 = vst.msk [vmem:[#allocation2 - $0x2] sm:$0x4] %vm497, %v303
        %vm499 = vcmask 259077
        %500 = vst.msk [vmem:[#allocation2 + $0xe] sm:$0x20] %vm499, %v304
        %v501 = vld [vmem:[#allocation2] sm:$0xff]
        %v502 = vld [vmem:[#allocation2 + $0x8] sm:$0xff]
        %v503 = vld [vmem:[#allocation2 + $0x1] sm:$0xff]
        %v504 = vld [vmem:[#allocation2 + $0x9] sm:$0xff]
        %v505 = vld [vmem:[#allocation2 + $0x2] sm:$0xff]
        %v506 = vld [vmem:[#allocation2 + $0xa] sm:$0xff]
        %v507 = vld [vmem:[#allocation2 + $0x3] sm:$0xff]
        %v508 = vld [vmem:[#allocation2 + $0xb] sm:$0xff]
        %v509 = vld [vmem:[#allocation2 + $0x4] sm:$0xff]
        %v510 = vld [vmem:[#allocation2 + $0xc] sm:$0xff]
        %513 = vrot.lane.b32.xlu0 %v503, 32
        %v514 = vpop.permute.xlu0 %513
        %515 = vrot.lane.b32.xlu0 %v504, 32
        %v516 = vpop.permute.xlu0 %515
        %521 = vrot.lane.b32.xlu0 %v505, 64
        %v522 = vpop.permute.xlu0 %521
        %523 = vrot.lane.b32.xlu0 %v506, 64
        %v524 = vpop.permute.xlu0 %523
        %529 = vrot.lane.b32.xlu0 %v507, 96
        %v530 = vpop.permute.xlu0 %529
        %531 = vrot.lane.b32.xlu0 %v508, 96
        %v532 = vpop.permute.xlu0 %531
        %v535 = vsel %vm319, %v501, %v514
        %v536 = vsel %vm319, %v502, %v516
        %v537 = vsel %vm350, %v535, %v522
        %v538 = vsel %vm350, %v536, %v524
        %v539 = vsel %vm402, %v537, %v530
        %v540 = vsel %vm402, %v538, %v532
        %v541 = vpack.c.bf16 %v540, %v539
        %v542 = vpack.c.bf16 %v510, %v509
        %v543 = vld [vmem:[%s2] sm:$0xf]
        %v544 = vld [vmem:[%s2 + $0x4] sm:$0xf]
        %v545 = vld [vmem:[%s2 + $0x8] sm:$0xf]
        %v546 = vld [vmem:[%s2 + $0xc] sm:$0xf]
        %v547 = vld [vmem:[%s2 + $0x10] sm:$0xf]
        %v548 = vld [vmem:[%s2 + $0x14] sm:$0xf]
        %v549 = vld [vmem:[%s2 + $0x18] sm:$0xf]
        %v550 = vld [vmem:[%s2 + $0x1c] sm:$0xf]
        %v551 = vld [vmem:[%s2 + $0x20] sm:$0xf]
        %v552 = vld [vmem:[%s2 + $0x24] sm:$0xf]
        %v553 = vld [vmem:[%s2 + $0x28] sm:$0xf]
        %v554 = vld [vmem:[%s2 + $0x2c] sm:$0xf]
        %v555 = vld [vmem:[%s2 + $0x30] sm:$0xf]
        %v556 = vld [vmem:[%s2 + $0x34] sm:$0xf]
        %v557 = vld [vmem:[%s2 + $0x38] sm:$0xf]
        %v558 = vld [vmem:[%s2 + $0x3c] sm:$0xf]
        %v559 = vld [vmem:[%s2 + $0x40] sm:$0xf]
        %v560 = vld [vmem:[%s2 + $0x44] sm:$0xf]
        %v561 = vld [vmem:[%s2 + $0x48] sm:$0xf]
        %v562 = vld [vmem:[%s2 + $0x4c] sm:$0xf]
        %v583 = vunpack.c.l.b16 %v543
        %v584 = vunpack.c.l.b16 %v544
        %v585 = vunpack.c.l.b16 %v545
        %v586 = vunpack.c.l.b16 %v546
        %v587 = vunpack.c.l.b16 %v547
        %v588 = vunpack.c.l.b16 %v548
        %v589 = vunpack.c.l.b16 %v549
        %v590 = vunpack.c.l.b16 %v550
        %v591 = vunpack.c.l.b16 %v551
        %v592 = vunpack.c.l.b16 %v552
        %v593 = vunpack.c.l.b16 %v553
        %v594 = vunpack.c.l.b16 %v554
        %v595 = vunpack.c.l.b16 %v555
        %v596 = vunpack.c.l.b16 %v556
        %v597 = vunpack.c.l.b16 %v557
        %v598 = vunpack.c.l.b16 %v558
        %v599 = vunpack.c.l.b16 %v559
        %v600 = vunpack.c.l.b16 %v560
        %v601 = vunpack.c.l.b16 %v561
        %v602 = vunpack.c.l.b16 %v562
        %v603 = vpack.c.b16 %v584, %v583
        %v604 = vpack.c.b16 %v586, %v585
        %v605 = vpack.c.b16 %v588, %v587
        %v606 = vpack.c.b16 %v590, %v589
        %v607 = vpack.c.b16 %v592, %v591
        %v608 = vpack.c.b16 %v594, %v593
        %v609 = vpack.c.b16 %v596, %v595
        %v610 = vpack.c.b16 %v598, %v597
        %v611 = vpack.c.b16 %v600, %v599
        %v612 = vpack.c.b16 %v602, %v601
        %v624 = vsel %vm319, %v542, 0
        %626 = vmatprep.subr.bf16.mxu0 0
        %627 = vmatpush1.bf16.msra.mxu0 %v603
        %628 = vmatprep.subr.bf16.mxu0 0
        %629 = vmatpush1.bf16.msra.mxu0 %v604
        %630 = vmatprep.subr.bf16.mxu0 0
        %631 = vmatpush1.bf16.msra.mxu0 %v605
        %632 = vmatprep.subr.bf16.mxu0 0
        %633 = vmatpush1.bf16.msra.mxu0 %v606
        %634 = vmatprep.subr.bf16.mxu0 0
        %635 = vmatpush1.bf16.msra.mxu0 %v607
        %636 = vmatprep.subr.bf16.mxu0 0
        %637 = vmatpush1.bf16.msra.mxu0 %v608
        %638 = vmatprep.subr.bf16.mxu0 0
        %639 = vmatpush1.bf16.msra.mxu0 %v609
        %640 = vmatprep.subr.bf16.mxu0 0
        %641 = vmatpush1.bf16.msra.mxu0 %v610
        %642 = vmatprep.subr.bf16.mxu0 0
        %643 = vmatpush1.bf16.msra.mxu0 %v611
        %644 = vmatprep.subr.bf16.mxu0 0
        %645 = vmatpush1.bf16.msra.mxu0 %v612
        %646 = vmatprep.subr.bf16.mxu0 0
        %647 = vmatpush1.bf16.msra.mxu0 0
        %648 = vmatprep.subr.bf16.mxu0 0
        %649 = vmatpush1.bf16.msra.mxu0 0
        %650 = vmatprep.subr.bf16.mxu0 0
        %651 = vmatpush1.bf16.msra.mxu0 0
        %652 = vmatprep.subr.bf16.mxu0 0
        %653 = vmatpush1.bf16.msra.mxu0 0
        %654 = vmatprep.subr.bf16.mxu0 0
        %655 = vmatpush1.bf16.msra.mxu0 0
        %656 = vmatprep.subr.bf16.mxu0 0
        %657 = vmatpush1.bf16.msra.mxu0 0
        %658 = vmatprep.mubr.bf16.mxu0 %v624
        %659 = vmatmul.mubr.bf16.gmra.mrb[0].mxu0 %v541
        %v660 = vpop.f32.mrb[0].mxu0
        %v661 = vadd.f32 0.0, %v660
        %v662 = vpop.f32.mrb[0].mxu0
        %v663 = vpop.f32.mrb[0].mxu0
        %v664 = vadd.f32 0.0, %v663
        %v665 = vpop.f32.mrb[0].mxu0
        %666 = vdwg.mxu0
        %v667 = vsel %vm319, %v661, 0.0
        %v668 = vsel %vm319, %v664, 0.0
        %v669 = vadd.f32 %v667, %v668
        %v670 = vrot.slane %v669, 4
        %v671 = vadd.f32 %v669, %v670
        %v672 = vrot.slane %v671, 2
        %v673 = vadd.f32 %v671, %v672
        %v674 = vrot.slane %v673, 1
        %v675 = vadd.f32 %v673, %v674
        %v676 = vmul.f32 %v675, %v456
        %v677 = vmul.f32 %v661, %v661
        %v678 = vmul.f32 %v664, %v664
        %v679 = vsel %vm319, %v677, 0.0
        %v680 = vsel %vm319, %v678, 0.0
        %v681 = vadd.f32 %v679, %v680
        %v682 = vrot.slane %v681, 4
        %v683 = vadd.f32 %v681, %v682
        %v684 = vrot.slane %v683, 2
        %v685 = vadd.f32 %v683, %v684
        %v686 = vrot.slane %v685, 1
        %v687 = vadd.f32 %v685, %v686
        %v688 = vmul.f32 %v687, %v456
        %v689 = vmul.f32 %v676, %v676
        %v690 = vsub.f32 %v688, %v689
        %v691 = vmax.f32 %v690, 0.0
        %v692 = vsub.f32 %v661, %v676
        %v693 = vsub.f32 %v664, %v676
        %v694 = vadd.f32 %v691, 0.001
        %v695 = vrsqrt.pop %v694
        %v696 = vmul.f32 %v692, %v695
        %v697 = vmul.f32 %v693, %v695
        %v698 = vxor.u32 %v696, 2147483648
        %v699 = vxor.u32 %v697, 2147483648
        %v700 = vmul.f32 %v698, 1.442695
        %v701 = vpow.pop %v700
        %v702 = vmul.f32 %v699, 1.442695
        %v703 = vpow.pop %v702
        %v704 = vadd.f32 %v701, 1.0
        %v705 = vadd.f32 %v703, 1.0
        %v706 = vrcp.pop %v704
        %v707 = vmul.f32 1.0, %v706
        %v708 = vrcp.pop %v705
        %v709 = vmul.f32 1.0, %v708
        %v710 = vmul.f32 %v696, %v707
        %v711 = vmul.f32 %v697, %v709
        %712 = vst.msk [vmem:[#allocation2 + $0x7] sm:$0xff] %vm319, %v491
        %713 = vst.msk [vmem:[#allocation2 + $0xf] sm:$0xff] %vm319, %v492
        %714 = vst.msk [vmem:[#allocation2 + $0x5] sm:$0x2] %vm322, %v491
        %715 = vst.msk [vmem:[#allocation2 + $0x11] sm:$0x40] %vm324, %v492
        %716 = vst.msk [vmem:[#allocation2 + $0x3] sm:$0x4] %vm497, %v491
        %717 = vst.msk [vmem:[#allocation2 + $0x13] sm:$0x20] %vm499, %v492
        %vm718 = vcmask 257027
        %719 = vst.msk [vmem:[#allocation2 + $0x1] sm:$0x8] %vm718, %v491
        %vm720 = vcmask 258052
        %721 = vst.msk [vmem:[#allocation2 + $0x15] sm:$0x10] %vm720, %v492
        %722 = vst.msk [vmem:[#allocation2 - $0x1] sm:$0x10] %vm720, %v491
        %723 = vst.msk [vmem:[#allocation2 + $0x17] sm:$0x8] %vm718, %v492
        %724 = vst.msk [vmem:[#allocation2 - $0x3] sm:$0x20] %vm499, %v491
        %725 = vst.msk [vmem:[#allocation2 + $0x19] sm:$0x4] %vm497, %v492
        %726 = vst.msk [vmem:[#allocation2 - $0x5] sm:$0x40] %vm324, %v491
        %727 = vst.msk [vmem:[#allocation2 + $0x1b] sm:$0x2] %vm322, %v492
        %vm728 = vcmask 261127
        %729 = vst.msk [vmem:[#allocation2 - $0x7] sm:$0x80] %vm728, %v491
        %vm730 = vcmask 253952
        %731 = vst.msk [vmem:[#allocation2 + $0x1d] sm:$0x1] %vm730, %v492
        %v732 = vld [vmem:[#allocation2] sm:$0xff]
        %v733 = vld [vmem:[#allocation2 + $0x8] sm:$0xff]
        %v734 = vld [vmem:[#allocation2 + $0x1] sm:$0xff]
        %v735 = vld [vmem:[#allocation2 + $0x9] sm:$0xff]
        %v736 = vld [vmem:[#allocation2 + $0x2] sm:$0xff]
        %v737 = vld [vmem:[#allocation2 + $0xa] sm:$0xff]
        %v738 = vld [vmem:[#allocation2 + $0x3] sm:$0xff]
        %v739 = vld [vmem:[#allocation2 + $0xb] sm:$0xff]
        %v740 = vld [vmem:[#allocation2 + $0x4] sm:$0xff]
        %v741 = vld [vmem:[#allocation2 + $0xc] sm:$0xff]
        %v742 = vld [vmem:[#allocation2 + $0x5] sm:$0xff]
        %v743 = vld [vmem:[#allocation2 + $0xd] sm:$0xff]
        %v744 = vld [vmem:[#allocation2 + $0x6] sm:$0xff]
        %v745 = vld [vmem:[#allocation2 + $0xe] sm:$0xff]
        %v746 = vld [vmem:[#allocation2 + $0x7] sm:$0xff]
        %v747 = vld [vmem:[#allocation2 + $0xf] sm:$0xff]
        %v748 = vld [vmem:[#allocation2 + $0x10] sm:$0xff]
        %v749 = vld [vmem:[#allocation2 + $0x11] sm:$0xff]
        %v750 = vld [vmem:[#allocation2 + $0x12] sm:$0xff]
        %v751 = vld [vmem:[#allocation2 + $0x13] sm:$0xff]
        %v752 = vld [vmem:[#allocation2 + $0x14] sm:$0xff]
        %v753 = vld [vmem:[#allocation2 + $0x15] sm:$0xff]
        %v754 = vld [vmem:[#allocation2 + $0x16] sm:$0xff]
        %757 = vrot.lane.b32.xlu0 %v734, 32
        %v758 = vpop.permute.xlu0 %757
        %759 = vrot.lane.b32.xlu0 %v735, 32
        %v760 = vpop.permute.xlu0 %759
        %765 = vrot.lane.b32.xlu0 %v736, 64
        %v766 = vpop.permute.xlu0 %765
        %767 = vrot.lane.b32.xlu0 %v737, 64
        %v768 = vpop.permute.xlu0 %767
        %773 = vrot.lane.b32.xlu0 %v738, 96
        %v774 = vpop.permute.xlu0 %773
        %775 = vrot.lane.b32.xlu0 %v739, 96
        %v776 = vpop.permute.xlu0 %775
        %781 = vrot.lane.b32.xlu0 %v742, 32
        %v782 = vpop.permute.xlu0 %781
        %783 = vrot.lane.b32.xlu0 %v743, 32
        %v784 = vpop.permute.xlu0 %783
        %789 = vrot.lane.b32.xlu0 %v744, 64
        %v790 = vpop.permute.xlu0 %789
        %791 = vrot.lane.b32.xlu0 %v745, 64
        %v792 = vpop.permute.xlu0 %791
        %797 = vrot.lane.b32.xlu0 %v746, 96
        %v798 = vpop.permute.xlu0 %797
        %799 = vrot.lane.b32.xlu0 %v747, 96
        %v800 = vpop.permute.xlu0 %799
        %804 = vrot.lane.b32.xlu0 %v749, 32
        %v805 = vpop.permute.xlu0 %804
        %808 = vrot.lane.b32.xlu0 %v750, 64
        %v809 = vpop.permute.xlu0 %808
        %812 = vrot.lane.b32.xlu0 %v751, 96
        %v813 = vpop.permute.xlu0 %812
        %816 = vrot.lane.b32.xlu0 %v753, 32
        %v817 = vpop.permute.xlu0 %816
        %820 = vrot.lane.b32.xlu0 %v754, 64
        %v821 = vpop.permute.xlu0 %820
        %v823 = vsel %vm319, %v732, %v758
        %v824 = vsel %vm319, %v733, %v760
        %v825 = vsel %vm350, %v823, %v766
        %v826 = vsel %vm350, %v824, %v768
        %v827 = vsel %vm402, %v825, %v774
        %v828 = vsel %vm402, %v826, %v776
        %v829 = vsel %vm319, %v740, %v782
        %v830 = vsel %vm319, %v741, %v784
        %v831 = vsel %vm350, %v829, %v790
        %v832 = vsel %vm350, %v830, %v792
        %v833 = vsel %vm402, %v831, %v798
        %v834 = vsel %vm402, %v832, %v800
        %v835 = vsel %vm319, %v748, %v805
        %v836 = vsel %vm350, %v835, %v809
        %v837 = vsel %vm402, %v836, %v813
        %v838 = vsel %vm319, %v752, %v817
        %v839 = vsel %vm350, %v838, %v821
        %v840 = vpack.c.bf16 %v828, %v827
        %v841 = vpack.c.bf16 %v834, %v833
        %v842 = vpack.c.bf16 %v837, %v828
        %v843 = vpack.c.bf16 %v839, %v832
        %v844 = vld [vmem:[#allocation3] sm:$0xf]
        %v845 = vld [vmem:[#allocation3 + $0x4] sm:$0xf]
        %v846 = vld [vmem:[#allocation3 + $0x8] sm:$0xf]
        %v847 = vld [vmem:[#allocation3 + $0xc] sm:$0xf]
        %v848 = vld [vmem:[#allocation3 + $0x10] sm:$0xf]
        %v849 = vld [vmem:[#allocation3 + $0x14] sm:$0xf]
        %v850 = vld [vmem:[#allocation3 + $0x18] sm:$0xf]
        %v851 = vld [vmem:[#allocation3 + $0x1c] sm:$0xf]
        %v852 = vld [vmem:[#allocation3 + $0x20] sm:$0xf]
        %v853 = vld [vmem:[#allocation3 + $0x24] sm:$0xf]
        %v854 = vld [vmem:[#allocation3 + $0x28] sm:$0xf]
        %v855 = vld [vmem:[#allocation3 + $0x2c] sm:$0xf]
        %v856 = vld [vmem:[#allocation3 + $0x30] sm:$0xf]
        %v857 = vld [vmem:[#allocation3 + $0x34] sm:$0xf]
        %v858 = vld [vmem:[#allocation3 + $0x38] sm:$0xf]
        %v859 = vld [vmem:[#allocation3 + $0x3c] sm:$0xf]
        %v860 = vld [vmem:[#allocation3 + $0x40] sm:$0xf]
        %v861 = vld [vmem:[#allocation3 + $0x44] sm:$0xf]
        %v862 = vld [vmem:[#allocation3 + $0x48] sm:$0xf]
        %v863 = vld [vmem:[#allocation3 + $0x4c] sm:$0xf]
        %v864 = vld [vmem:[#allocation3 + $0x50] sm:$0xf]
        %v865 = vld [vmem:[#allocation3 + $0x54] sm:$0xf]
        %v866 = vld [vmem:[#allocation3 + $0x58] sm:$0xf]
        %v867 = vld [vmem:[#allocation3 + $0x5c] sm:$0xf]
        %v868 = vld [vmem:[#allocation3 + $0x60] sm:$0xf]
        %v869 = vld [vmem:[#allocation3 + $0x64] sm:$0xf]
        %v870 = vld [vmem:[#allocation3 + $0x68] sm:$0xf]
        %v871 = vld [vmem:[#allocation3 + $0x6c] sm:$0xf]
        %v872 = vld [vmem:[#allocation3 + $0x70] sm:$0xf]
        %v873 = vld [vmem:[#allocation3 + $0x74] sm:$0xf]
        %v874 = vld [vmem:[#allocation3 + $0x78] sm:$0xf]
        %v875 = vld [vmem:[#allocation3 + $0x7c] sm:$0xf]
        %v876 = vld [vmem:[#allocation3 + $0x80] sm:$0xf]
        %v877 = vld [vmem:[#allocation3 + $0x84] sm:$0xf]
        %v878 = vld [vmem:[#allocation3 + $0x88] sm:$0xf]
        %v879 = vld [vmem:[#allocation3 + $0x8c] sm:$0xf]
        %v880 = vld [vmem:[#allocation3 + $0x90] sm:$0xf]
        %v881 = vld [vmem:[#allocation3 + $0x94] sm:$0xf]
        %v882 = vld [vmem:[#allocation3 + $0x98] sm:$0xf]
        %v883 = vld [vmem:[#allocation3 + $0x9c] sm:$0xf]
        %v884 = vld [vmem:[#allocation3 + $0xa0] sm:$0xf]
        %v885 = vld [vmem:[#allocation3 + $0xa4] sm:$0xf]
        %v886 = vld [vmem:[#allocation3 + $0xa8] sm:$0xf]
        %v887 = vld [vmem:[#allocation3 + $0xac] sm:$0xf]
        %v888 = vld [vmem:[#allocation3 + $0xb0] sm:$0xf]
        %v889 = vld [vmem:[#allocation3 + $0xb4] sm:$0xf]
        %v890 = vld [vmem:[#allocation3 + $0xb8] sm:$0xf]
        %v891 = vld [vmem:[#allocation3 + $0xbc] sm:$0xf]
        %v892 = vld [vmem:[#allocation3 + $0xc0] sm:$0xf]
        %v893 = vld [vmem:[#allocation3 + $0xc4] sm:$0xf]
        %v894 = vld [vmem:[#allocation3 + $0xc8] sm:$0xf]
        %v895 = vld [vmem:[#allocation3 + $0xcc] sm:$0xf]
        %v896 = vld [vmem:[#allocation3 + $0xd0] sm:$0xf]
        %v897 = vld [vmem:[#allocation3 + $0xd4] sm:$0xf]
        %v898 = vld [vmem:[#allocation3 + $0xd8] sm:$0xf]
        %v899 = vld [vmem:[#allocation3 + $0xdc] sm:$0xf]
        %v900 = vld [vmem:[#allocation3 + $0xe0] sm:$0xf]
        %v901 = vld [vmem:[#allocation3 + $0xe4] sm:$0xf]
        %v902 = vld [vmem:[#allocation3 + $0xe8] sm:$0xf]
        %v903 = vld [vmem:[#allocation3 + $0xec] sm:$0xf]
        %v964 = vunpack.c.l.b16 %v844
        %v965 = vunpack.c.l.b16 %v845
        %v966 = vunpack.c.l.b16 %v846
        %v967 = vunpack.c.l.b16 %v847
        %v968 = vunpack.c.l.b16 %v848
        %v969 = vunpack.c.l.b16 %v849
        %v970 = vunpack.c.l.b16 %v850
        %v971 = vunpack.c.l.b16 %v851
        %v972 = vunpack.c.l.b16 %v852
        %v973 = vunpack.c.l.b16 %v853
        %v974 = vunpack.c.l.b16 %v854
        %v975 = vunpack.c.l.b16 %v855
        %v976 = vunpack.c.l.b16 %v856
        %v977 = vunpack.c.l.b16 %v857
        %v978 = vunpack.c.l.b16 %v858
        %v979 = vunpack.c.l.b16 %v859
        %v980 = vunpack.c.l.b16 %v860
        %v981 = vunpack.c.l.b16 %v861
        %v982 = vunpack.c.l.b16 %v862
        %v983 = vunpack.c.l.b16 %v863
        %v984 = vunpack.c.l.b16 %v864
        %v985 = vunpack.c.l.b16 %v865
        %v986 = vunpack.c.l.b16 %v866
        %v987 = vunpack.c.l.b16 %v867
        %v988 = vunpack.c.l.b16 %v868
        %v989 = vunpack.c.l.b16 %v869
        %v990 = vunpack.c.l.b16 %v870
        %v991 = vunpack.c.l.b16 %v871
        %v992 = vunpack.c.l.b16 %v872
        %v993 = vunpack.c.l.b16 %v873
        %v994 = vunpack.c.l.b16 %v874
        %v995 = vunpack.c.l.b16 %v875
        %v996 = vunpack.c.l.b16 %v876
        %v997 = vunpack.c.l.b16 %v877
        %v998 = vunpack.c.l.b16 %v878
        %v999 = vunpack.c.l.b16 %v879
        %v1000 = vunpack.c.l.b16 %v880
        %v1001 = vunpack.c.l.b16 %v881
        %v1002 = vunpack.c.l.b16 %v882
        %v1003 = vunpack.c.l.b16 %v883
        %v1004 = vunpack.c.l.b16 %v884
        %v1005 = vunpack.c.l.b16 %v885
        %v1006 = vunpack.c.l.b16 %v886
        %v1007 = vunpack.c.l.b16 %v887
        %v1008 = vunpack.c.l.b16 %v888
        %v1009 = vunpack.c.l.b16 %v889
        %v1010 = vunpack.c.l.b16 %v890
        %v1011 = vunpack.c.l.b16 %v891
        %v1012 = vunpack.c.l.b16 %v892
        %v1013 = vunpack.c.l.b16 %v893
        %v1014 = vunpack.c.l.b16 %v894
        %v1015 = vunpack.c.l.b16 %v895
        %v1016 = vunpack.c.l.b16 %v896
        %v1017 = vunpack.c.l.b16 %v897
        %v1018 = vunpack.c.l.b16 %v898
        %v1019 = vunpack.c.l.b16 %v899
        %v1020 = vunpack.c.l.b16 %v900
        %v1021 = vunpack.c.l.b16 %v901
        %v1022 = vunpack.c.l.b16 %v902
        %v1023 = vunpack.c.l.b16 %v903
        %v1024 = vpack.c.b16 %v965, %v964
        %v1025 = vpack.c.b16 %v967, %v966
        %v1026 = vpack.c.b16 %v969, %v968
        %v1027 = vpack.c.b16 %v971, %v970
        %v1028 = vpack.c.b16 %v973, %v972
        %v1029 = vpack.c.b16 %v975, %v974
        %v1030 = vpack.c.b16 %v977, %v976
        %v1031 = vpack.c.b16 %v979, %v978
        %v1032 = vpack.c.b16 %v981, %v980
        %v1033 = vpack.c.b16 %v983, %v982
        %v1034 = vpack.c.b16 %v985, %v984
        %v1035 = vpack.c.b16 %v987, %v986
        %v1036 = vpack.c.b16 %v989, %v988
        %v1037 = vpack.c.b16 %v991, %v990
        %v1038 = vpack.c.b16 %v993, %v992
        %v1039 = vpack.c.b16 %v995, %v994
        %v1040 = vpack.c.b16 %v997, %v996
        %v1041 = vpack.c.b16 %v999, %v998
        %v1042 = vpack.c.b16 %v1001, %v1000
        %v1043 = vpack.c.b16 %v1003, %v1002
        %v1044 = vpack.c.b16 %v1005, %v1004
        %v1045 = vpack.c.b16 %v1007, %v1006
        %v1046 = vpack.c.b16 %v1009, %v1008
        %v1047 = vpack.c.b16 %v1011, %v1010
        %v1048 = vpack.c.b16 %v1013, %v1012
        %v1049 = vpack.c.b16 %v1015, %v1014
        %v1050 = vpack.c.b16 %v1017, %v1016
        %v1051 = vpack.c.b16 %v1019, %v1018
        %v1052 = vpack.c.b16 %v1021, %v1020
        %v1053 = vpack.c.b16 %v1023, %v1022
        %v1085 = vsel %vm402, %v843, 0
        %1087 = vmatprep.subr.bf16.mxu0 0
        %1088 = vmatpush1.bf16.msra.mxu0 %v1024
        %1089 = vmatprep.subr.bf16.mxu0 0
        %1090 = vmatpush1.bf16.msra.mxu0 %v1025
        %1091 = vmatprep.subr.bf16.mxu0 0
        %1092 = vmatpush1.bf16.msra.mxu0 %v1026
        %1093 = vmatprep.subr.bf16.mxu0 0
        %1094 = vmatpush1.bf16.msra.mxu0 %v1027
        %1095 = vmatprep.subr.bf16.mxu0 0
        %1096 = vmatpush1.bf16.msra.mxu0 %v1028
        %1097 = vmatprep.subr.bf16.mxu0 0
        %1098 = vmatpush1.bf16.msra.mxu0 %v1029
        %1099 = vmatprep.subr.bf16.mxu0 0
        %1100 = vmatpush1.bf16.msra.mxu0 %v1030
        %1101 = vmatprep.subr.bf16.mxu0 0
        %1102 = vmatpush1.bf16.msra.mxu0 %v1031
        %1103 = vmatprep.subr.bf16.mxu0 0
        %1104 = vmatpush1.bf16.msra.mxu0 %v1032
        %1105 = vmatprep.subr.bf16.mxu0 0
        %1106 = vmatpush1.bf16.msra.mxu0 %v1033
        %1107 = vmatprep.subr.bf16.mxu0 0
        %1108 = vmatpush1.bf16.msra.mxu0 %v1034
        %1109 = vmatprep.subr.bf16.mxu0 0
        %1110 = vmatpush1.bf16.msra.mxu0 %v1035
        %1111 = vmatprep.subr.bf16.mxu0 0
        %1112 = vmatpush1.bf16.msra.mxu0 %v1036
        %1113 = vmatprep.subr.bf16.mxu0 0
        %1114 = vmatpush1.bf16.msra.mxu0 %v1037
        %1115 = vmatprep.subr.bf16.mxu0 0
        %1116 = vmatpush1.bf16.msra.mxu0 %v1038
        %1117 = vmatprep.subr.bf16.mxu0 0
        %1118 = vmatpush1.bf16.msra.mxu0 %v1039
        %1119 = vmatprep.mubr.bf16.mxu0 %v841
        %1120 = vmatmul.mubr.bf16.gmra.mrb[0].mxu0 %v840
        %v1121 = vpop.f32.mrb[0].mxu0
        %v1122 = vadd.f32 0.0, %v1121
        %v1123 = vpop.f32.mrb[0].mxu0
        %v1124 = vpop.f32.mrb[0].mxu0
        %v1125 = vadd.f32 0.0, %v1124
        %v1126 = vpop.f32.mrb[0].mxu0
        %1127 = vdwg.mxu0
        %1128 = vmatprep.subr.bf16.mxu0 0
        %1129 = vmatpush1.bf16.msra.mxu0 %v1040
        %1130 = vmatprep.subr.bf16.mxu0 0
        %1131 = vmatpush1.bf16.msra.mxu0 %v1041
        %1132 = vmatprep.subr.bf16.mxu0 0
        %1133 = vmatpush1.bf16.msra.mxu0 %v1042
        %1134 = vmatprep.subr.bf16.mxu0 0
        %1135 = vmatpush1.bf16.msra.mxu0 %v1043
        %1136 = vmatprep.subr.bf16.mxu0 0
        %1137 = vmatpush1.bf16.msra.mxu0 %v1044
        %1138 = vmatprep.subr.bf16.mxu0 0
        %1139 = vmatpush1.bf16.msra.mxu0 %v1045
        %1140 = vmatprep.subr.bf16.mxu0 0
        %1141 = vmatpush1.bf16.msra.mxu0 %v1046
        %1142 = vmatprep.subr.bf16.mxu0 0
        %1143 = vmatpush1.bf16.msra.mxu0 %v1047
        %1144 = vmatprep.subr.bf16.mxu0 0
        %1145 = vmatpush1.bf16.msra.mxu0 %v1048
        %1146 = vmatprep.subr.bf16.mxu0 0
        %1147 = vmatpush1.bf16.msra.mxu0 %v1049
        %1148 = vmatprep.subr.bf16.mxu0 0
        %1149 = vmatpush1.bf16.msra.mxu0 %v1050
        %1150 = vmatprep.subr.bf16.mxu0 0
        %1151 = vmatpush1.bf16.msra.mxu0 %v1051
        %1152 = vmatprep.subr.bf16.mxu0 0
        %1153 = vmatpush1.bf16.msra.mxu0 %v1052
        %1154 = vmatprep.subr.bf16.mxu0 0
        %1155 = vmatpush1.bf16.msra.mxu0 %v1053
        %1156 = vmatprep.subr.bf16.mxu0 0
        %1157 = vmatpush1.bf16.msra.mxu0 0
        %1158 = vmatprep.subr.bf16.mxu0 0
        %1159 = vmatpush1.bf16.msra.mxu0 0
        %1160 = vmatprep.mubr.bf16.mxu0 %v1085
        %1161 = vmatmul.mubr.bf16.gmra.mrb[0].mxu0 %v842
        %v1162 = vpop.f32.mrb[0].mxu0
        %v1163 = vadd.f32 %v1122, %v1162
        %v1164 = vpop.f32.mrb[0].mxu0
        %v1165 = vpop.f32.mrb[0].mxu0
        %v1166 = vadd.f32 %v1125, %v1165
        %v1167 = vpop.f32.mrb[0].mxu0
        %1168 = vdwg.mxu0
        %v1169 = vld [vmem:[%s4] sm:$0x1]
        %v1171 = vlaneseq
        %v1172 = vshrl.u32 %v1171, 7
        %v1173 = vsub.s32 0, %v1172
        %v1174 = vrot.slane %v1169, %v1173
        %v1176 = vadd.f32 %v1163, %v1174
        %v1177 = vadd.f32 %v1166, %v1174
        %1178 = vst.msk [vmem:[#allocation2 + $0x4] sm:$0xff] %vm319, %v1176
        %1179 = vst.msk [vmem:[#allocation2 + $0xc] sm:$0xff] %vm319, %v1177
        %1180 = vst.msk [vmem:[#allocation2 + $0x2] sm:$0x2] %vm322, %v1176
        %1181 = vst.msk [vmem:[#allocation2 + $0xe] sm:$0x40] %vm324, %v1177
        %1182 = vst.msk [vmem:[#allocation2] sm:$0x4] %vm497, %v1176
        %1183 = vst.msk [vmem:[#allocation2 + $0x10] sm:$0x20] %vm499, %v1177
        %1184 = vst.msk [vmem:[#allocation2 - $0x2] sm:$0x8] %vm718, %v1176
        %1185 = vst.msk [vmem:[#allocation2 + $0x12] sm:$0x10] %vm720, %v1177
        %1186 = vst.msk [vmem:[#allocation2 - $0x4] sm:$0x10] %vm720, %v1176
        %1187 = vst.msk [vmem:[#allocation2 + $0x14] sm:$0x8] %vm718, %v1177
        %v1188 = vld [vmem:[#allocation2] sm:$0xff]
        %v1189 = vld [vmem:[#allocation2 + $0x8] sm:$0xff]
        %v1190 = vld [vmem:[#allocation2 + $0x1] sm:$0xff]
        %v1191 = vld [vmem:[#allocation2 + $0x9] sm:$0xff]
        %v1192 = vld [vmem:[#allocation2 + $0x2] sm:$0xff]
        %v1193 = vld [vmem:[#allocation2 + $0xa] sm:$0xff]
        %v1194 = vld [vmem:[#allocation2 + $0x3] sm:$0xff]
        %v1195 = vld [vmem:[#allocation2 + $0xb] sm:$0xff]
        %v1196 = vld [vmem:[#allocation2 + $0x4] sm:$0xff]
        %v1197 = vld [vmem:[#allocation2 + $0xc] sm:$0xff]
        %v1198 = vld [vmem:[#allocation2 + $0x5] sm:$0xff]
        %v1199 = vld [vmem:[#allocation2 + $0xd] sm:$0xff]
        %v1200 = vld [vmem:[#allocation2 + $0x6] sm:$0xff]
        %v1201 = vld [vmem:[#allocation2 + $0xe] sm:$0xff]
        %v1202 = vld [vmem:[#allocation2 + $0x7] sm:$0xff]
        %v1203 = vld [vmem:[#allocation2 + $0xf] sm:$0xff]
        %v1204 = vld [vmem:[#allocation2 + $0x10] sm:$0xff]
        %1207 = vrot.lane.b32.xlu0 %v1190, 32
        %v1208 = vpop.permute.xlu0 %1207
        %1209 = vrot.lane.b32.xlu0 %v1191, 32
        %v1210 = vpop.permute.xlu0 %1209
        %1215 = vrot.lane.b32.xlu0 %v1192, 64
        %v1216 = vpop.permute.xlu0 %1215
        %1217 = vrot.lane.b32.xlu0 %v1193, 64
        %v1218 = vpop.permute.xlu0 %1217
        %1223 = vrot.lane.b32.xlu0 %v1194, 96
        %v1224 = vpop.permute.xlu0 %1223
        %1225 = vrot.lane.b32.xlu0 %v1195, 96
        %v1226 = vpop.permute.xlu0 %1225
        %1231 = vrot.lane.b32.xlu0 %v1198, 32
        %v1232 = vpop.permute.xlu0 %1231
        %1233 = vrot.lane.b32.xlu0 %v1199, 32
        %v1234 = vpop.permute.xlu0 %1233
        %1239 = vrot.lane.b32.xlu0 %v1200, 64
        %v1240 = vpop.permute.xlu0 %1239
        %1241 = vrot.lane.b32.xlu0 %v1201, 64
        %v1242 = vpop.permute.xlu0 %1241
        %1247 = vrot.lane.b32.xlu0 %v1202, 96
        %v1248 = vpop.permute.xlu0 %1247
        %1249 = vrot.lane.b32.xlu0 %v1203, 96
        %v1250 = vpop.permute.xlu0 %1249
        %v1253 = vsel %vm319, %v1188, %v1208
        %v1254 = vsel %vm319, %v1189, %v1210
        %v1255 = vsel %vm350, %v1253, %v1216
        %v1256 = vsel %vm350, %v1254, %v1218
        %v1257 = vsel %vm402, %v1255, %v1224
        %v1258 = vsel %vm402, %v1256, %v1226
        %v1259 = vsel %vm319, %v1196, %v1232
        %v1260 = vsel %vm319, %v1197, %v1234
        %v1261 = vsel %vm350, %v1259, %v1240
        %v1262 = vsel %vm350, %v1260, %v1242
        %v1263 = vsel %vm402, %v1261, %v1248
        %v1264 = vsel %vm402, %v1262, %v1250
        %v1265 = vpack.c.bf16 %v1258, %v1257
        %v1266 = vpack.c.bf16 %v1264, %v1263
        %v1267 = vpack.c.bf16 %v1204, %v1189
        %v1268 = vld [vmem:[#allocation5] sm:$0xf]
        %v1269 = vld [vmem:[#allocation5 + $0x4] sm:$0xf]
        %v1270 = vld [vmem:[#allocation5 + $0x8] sm:$0xf]
        %v1271 = vld [vmem:[#allocation5 + $0xc] sm:$0xf]
        %v1272 = vld [vmem:[#allocation5 + $0x10] sm:$0xf]
        %v1273 = vld [vmem:[#allocation5 + $0x14] sm:$0xf]
        %v1274 = vld [vmem:[#allocation5 + $0x18] sm:$0xf]
        %v1275 = vld [vmem:[#allocation5 + $0x1c] sm:$0xf]
        %v1276 = vld [vmem:[#allocation5 + $0x20] sm:$0xf]
        %v1277 = vld [vmem:[#allocation5 + $0x24] sm:$0xf]
        %v1278 = vld [vmem:[#allocation5 + $0x28] sm:$0xf]
        %v1279 = vld [vmem:[#allocation5 + $0x2c] sm:$0xf]
        %v1280 = vld [vmem:[#allocation5 + $0x30] sm:$0xf]
        %v1281 = vld [vmem:[#allocation5 + $0x34] sm:$0xf]
        %v1282 = vld [vmem:[#allocation5 + $0x38] sm:$0xf]
        %v1283 = vld [vmem:[#allocation5 + $0x3c] sm:$0xf]
        %v1284 = vld [vmem:[#allocation5 + $0x40] sm:$0xf]
        %v1285 = vld [vmem:[#allocation5 + $0x44] sm:$0xf]
        %v1286 = vld [vmem:[#allocation5 + $0x48] sm:$0xf]
        %v1287 = vld [vmem:[#allocation5 + $0x4c] sm:$0xf]
        %v1288 = vld [vmem:[#allocation5 + $0x50] sm:$0xf]
        %v1289 = vld [vmem:[#allocation5 + $0x54] sm:$0xf]
        %v1290 = vld [vmem:[#allocation5 + $0x58] sm:$0xf]
        %v1291 = vld [vmem:[#allocation5 + $0x5c] sm:$0xf]
        %v1292 = vld [vmem:[#allocation5 + $0x60] sm:$0xf]
        %v1293 = vld [vmem:[#allocation5 + $0x64] sm:$0xf]
        %v1294 = vld [vmem:[#allocation5 + $0x68] sm:$0xf]
        %v1295 = vld [vmem:[#allocation5 + $0x6c] sm:$0xf]
        %v1296 = vld [vmem:[#allocation5 + $0x70] sm:$0xf]
        %v1297 = vld [vmem:[#allocation5 + $0x74] sm:$0xf]
        %v1298 = vld [vmem:[#allocation5 + $0x78] sm:$0xf]
        %v1299 = vld [vmem:[#allocation5 + $0x7c] sm:$0xf]
        %v1300 = vld [vmem:[#allocation5 + $0x80] sm:$0xf]
        %v1301 = vld [vmem:[#allocation5 + $0x84] sm:$0xf]
        %v1302 = vld [vmem:[#allocation5 + $0x88] sm:$0xf]
        %v1303 = vld [vmem:[#allocation5 + $0x8c] sm:$0xf]
        %v1340 = vunpack.c.l.b16 %v1268
        %v1341 = vunpack.c.l.b16 %v1269
        %v1342 = vunpack.c.l.b16 %v1270
        %v1343 = vunpack.c.l.b16 %v1271
        %v1344 = vunpack.c.l.b16 %v1272
        %v1345 = vunpack.c.l.b16 %v1273
        %v1346 = vunpack.c.l.b16 %v1274
        %v1347 = vunpack.c.l.b16 %v1275
        %v1348 = vunpack.c.l.b16 %v1276
        %v1349 = vunpack.c.l.b16 %v1277
        %v1350 = vunpack.c.l.b16 %v1278
        %v1351 = vunpack.c.l.b16 %v1279
        %v1352 = vunpack.c.l.b16 %v1280
        %v1353 = vunpack.c.l.b16 %v1281
        %v1354 = vunpack.c.l.b16 %v1282
        %v1355 = vunpack.c.l.b16 %v1283
        %v1356 = vunpack.c.l.b16 %v1284
        %v1357 = vunpack.c.l.b16 %v1285
        %v1358 = vunpack.c.l.b16 %v1286
        %v1359 = vunpack.c.l.b16 %v1287
        %v1360 = vunpack.c.l.b16 %v1288
        %v1361 = vunpack.c.l.b16 %v1289
        %v1362 = vunpack.c.l.b16 %v1290
        %v1363 = vunpack.c.l.b16 %v1291
        %v1364 = vunpack.c.l.b16 %v1292
        %v1365 = vunpack.c.l.b16 %v1293
        %v1366 = vunpack.c.l.b16 %v1294
        %v1367 = vunpack.c.l.b16 %v1295
        %v1368 = vunpack.c.l.b16 %v1296
        %v1369 = vunpack.c.l.b16 %v1297
        %v1370 = vunpack.c.l.b16 %v1298
        %v1371 = vunpack.c.l.b16 %v1299
        %v1372 = vunpack.c.l.b16 %v1300
        %v1373 = vunpack.c.l.b16 %v1301
        %v1374 = vunpack.c.l.b16 %v1302
        %v1375 = vunpack.c.l.b16 %v1303
        %v1376 = vpack.c.b16 %v1341, %v1340
        %v1377 = vpack.c.b16 %v1343, %v1342
        %v1378 = vpack.c.b16 %v1345, %v1344
        %v1379 = vpack.c.b16 %v1347, %v1346
        %v1380 = vpack.c.b16 %v1349, %v1348
        %v1381 = vpack.c.b16 %v1351, %v1350
        %v1382 = vpack.c.b16 %v1353, %v1352
        %v1383 = vpack.c.b16 %v1355, %v1354
        %v1384 = vpack.c.b16 %v1357, %v1356
        %v1385 = vpack.c.b16 %v1359, %v1358
        %v1386 = vpack.c.b16 %v1361, %v1360
        %v1387 = vpack.c.b16 %v1363, %v1362
        %v1388 = vpack.c.b16 %v1365, %v1364
        %v1389 = vpack.c.b16 %v1367, %v1366
        %v1390 = vpack.c.b16 %v1369, %v1368
        %v1391 = vpack.c.b16 %v1371, %v1370
        %v1392 = vpack.c.b16 %v1373, %v1372
        %v1393 = vpack.c.b16 %v1375, %v1374
        %v1413 = vsel %vm319, %v1267, 0
        %1415 = vmatprep.subr.bf16.mxu0 0
        %1416 = vmatpush1.bf16.msra.mxu0 %v1376
        %1417 = vmatprep.subr.bf16.mxu0 0
        %1418 = vmatpush1.bf16.msra.mxu0 %v1377
        %1419 = vmatprep.subr.bf16.mxu0 0
        %1420 = vmatpush1.bf16.msra.mxu0 %v1378
        %1421 = vmatprep.subr.bf16.mxu0 0
        %1422 = vmatpush1.bf16.msra.mxu0 %v1379
        %1423 = vmatprep.subr.bf16.mxu0 0
        %1424 = vmatpush1.bf16.msra.mxu0 %v1380
        %1425 = vmatprep.subr.bf16.mxu0 0
        %1426 = vmatpush1.bf16.msra.mxu0 %v1381
        %1427 = vmatprep.subr.bf16.mxu0 0
        %1428 = vmatpush1.bf16.msra.mxu0 %v1382
        %1429 = vmatprep.subr.bf16.mxu0 0
        %1430 = vmatpush1.bf16.msra.mxu0 %v1383
        %1431 = vmatprep.subr.bf16.mxu0 0
        %1432 = vmatpush1.bf16.msra.mxu0 %v1384
        %1433 = vmatprep.subr.bf16.mxu0 0
        %1434 = vmatpush1.bf16.msra.mxu0 %v1385
        %1435 = vmatprep.subr.bf16.mxu0 0
        %1436 = vmatpush1.bf16.msra.mxu0 %v1386
        %1437 = vmatprep.subr.bf16.mxu0 0
        %1438 = vmatpush1.bf16.msra.mxu0 %v1387
        %1439 = vmatprep.subr.bf16.mxu0 0
        %1440 = vmatpush1.bf16.msra.mxu0 %v1388
        %1441 = vmatprep.subr.bf16.mxu0 0
        %1442 = vmatpush1.bf16.msra.mxu0 %v1389
        %1443 = vmatprep.subr.bf16.mxu0 0
        %1444 = vmatpush1.bf16.msra.mxu0 %v1390
        %1445 = vmatprep.subr.bf16.mxu0 0
        %1446 = vmatpush1.bf16.msra.mxu0 %v1391
        %1447 = vmatprep.mubr.bf16.mxu0 %v1266
        %1448 = vmatmul.mubr.bf16.gmra.mrb[0].mxu0 %v1265
        %v1449 = vpop.f32.mrb[0].mxu0
        %v1450 = vadd.f32 0.0, %v1449
        %v1451 = vpop.f32.mrb[0].mxu0
        %v1452 = vpop.f32.mrb[0].mxu0
        %v1453 = vadd.f32 0.0, %v1452
        %v1454 = vpop.f32.mrb[0].mxu0
        %1455 = vdwg.mxu0
        %1456 = vmatprep.subr.bf16.mxu0 0
        %1457 = vmatpush1.bf16.msra.mxu0 %v1392
        %1458 = vmatprep.subr.bf16.mxu0 0
        %1459 = vmatpush1.bf16.msra.mxu0 %v1393
        %1460 = vmatprep.subr.bf16.mxu0 0
        %1461 = vmatpush1.bf16.msra.mxu0 0
        %1462 = vmatprep.subr.bf16.mxu0 0
        %1463 = vmatpush1.bf16.msra.mxu0 0
        %1464 = vmatprep.subr.bf16.mxu0 0
        %1465 = vmatpush1.bf16.msra.mxu0 0
        %1466 = vmatprep.subr.bf16.mxu0 0
        %1467 = vmatpush1.bf16.msra.mxu0 0
        %1468 = vmatprep.subr.bf16.mxu0 0
        %1469 = vmatpush1.bf16.msra.mxu0 0
        %1470 = vmatprep.subr.bf16.mxu0 0
        %1471 = vmatpush1.bf16.msra.mxu0 0
        %1472 = vmatprep.subr.bf16.mxu0 0
        %1473 = vmatpush1.bf16.msra.mxu0 0
        %1474 = vmatprep.subr.bf16.mxu0 0
        %1475 = vmatpush1.bf16.msra.mxu0 0
        %1476 = vmatprep.subr.bf16.mxu0 0
        %1477 = vmatpush1.bf16.msra.mxu0 0
        %1478 = vmatprep.subr.bf16.mxu0 0
        %1479 = vmatpush1.bf16.msra.mxu0 0
        %1480 = vmatprep.subr.bf16.mxu0 0
        %1481 = vmatpush1.bf16.msra.mxu0 0
        %1482 = vmatprep.subr.bf16.mxu0 0
        %1483 = vmatpush1.bf16.msra.mxu0 0
        %1484 = vmatprep.subr.bf16.mxu0 0
        %1485 = vmatpush1.bf16.msra.mxu0 0
        %1486 = vmatprep.subr.bf16.mxu0 0
        %1487 = vmatpush1.bf16.msra.mxu0 0
        %1488 = vmatprep.mubr.bf16.mxu0 0
        %1489 = vmatmul.mubr.bf16.gmra.mrb[0].mxu0 %v1413
        %v1490 = vpop.f32.mrb[0].mxu0
        %v1491 = vadd.f32 %v1450, %v1490
        %v1492 = vpop.f32.mrb[0].mxu0
        %v1493 = vpop.f32.mrb[0].mxu0
        %v1494 = vadd.f32 %v1453, %v1493
        %v1495 = vpop.f32.mrb[0].mxu0
        %1496 = vdwg.mxu0
        %v1497 = vsel %vm319, %v1491, 0.0
        %v1498 = vsel %vm319, %v1494, 0.0
        %v1499 = vadd.f32 %v1497, %v1498
        %v1500 = vrot.slane %v1499, 4
        %v1501 = vadd.f32 %v1499, %v1500
        %v1502 = vrot.slane %v1501, 2
        %v1503 = vadd.f32 %v1501, %v1502
        %v1504 = vrot.slane %v1503, 1
        %v1505 = vadd.f32 %v1503, %v1504
        %v1506 = vmul.f32 %v1505, %v456
        %v1507 = vmul.f32 %v1491, %v1491
        %v1508 = vmul.f32 %v1494, %v1494
        %v1509 = vsel %vm319, %v1507, 0.0
        %v1510 = vsel %vm319, %v1508, 0.0
        %v1511 = vadd.f32 %v1509, %v1510
        %v1512 = vrot.slane %v1511, 4
        %v1513 = vadd.f32 %v1511, %v1512
        %v1514 = vrot.slane %v1513, 2
        %v1515 = vadd.f32 %v1513, %v1514
        %v1516 = vrot.slane %v1515, 1
        %v1517 = vadd.f32 %v1515, %v1516
        %v1518 = vmul.f32 %v1517, %v456
        %v1519 = vmul.f32 %v1506, %v1506
        %v1520 = vsub.f32 %v1518, %v1519
        %v1521 = vmax.f32 %v1520, 0.0
        %v1522 = vsub.f32 %v1491, %v1506
        %v1523 = vsub.f32 %v1494, %v1506
        %v1524 = vadd.f32 %v1521, 0.001
        %v1525 = vrsqrt.pop %v1524
        %v1526 = vmul.f32 %v1522, %v1525
        %v1527 = vmul.f32 %v1523, %v1525
        %v1528 = vxor.u32 %v1526, 2147483648
        %v1529 = vxor.u32 %v1527, 2147483648
        %v1530 = vmul.f32 %v1528, 1.442695
        %v1531 = vpow.pop %v1530
        %v1532 = vmul.f32 %v1529, 1.442695
        %v1533 = vpow.pop %v1532
        %v1534 = vadd.f32 %v1531, 1.0
        %v1535 = vadd.f32 %v1533, 1.0
        %v1536 = vrcp.pop %v1534
        %v1537 = vmul.f32 1.0, %v1536
        %v1538 = vrcp.pop %v1535
        %v1539 = vmul.f32 1.0, %v1538
        %v1540 = vmul.f32 %v1526, %v1537
        %v1541 = vmul.f32 %v1527, %v1539
        %1542 = vst.msk [vmem:[#allocation2 + $0x1] sm:$0xff] %vm319, %v1540
        %1543 = vst.msk [vmem:[#allocation2 + $0x9] sm:$0xff] %vm319, %v1541
        %1544 = vst.msk [vmem:[#allocation2] sm:$0x1] %vm730, -inf
        %1545 = vst.msk [vmem:[#allocation2 + $0x11] sm:$0x1] %vm730, -inf
        %v1546 = vld [vmem:[#allocation2] sm:$0xff]
        %v1547 = vld [vmem:[#allocation2 + $0x8] sm:$0xff]
        %v1548 = vld [vmem:[#allocation2 + $0x2] sm:$0xff]
        %v1549 = vld [vmem:[#allocation2 + $0xa] sm:$0xff]
        %v1550 = vmax.f32 %v1546, %v1548
        %v1551 = vmax.f32 %v1547, %v1549
        %v1552 = vmax.f32 %v1540, %v1550
        %v1553 = vmax.f32 %v1541, %v1551
        %1554 = vst.msk [vmem:[#allocation2 + $0x2] sm:$0xff] %vm319, %v1540
        %1555 = vst.msk [vmem:[#allocation2 + $0xa] sm:$0xff] %vm319, %v1541
        %vm1556 = vcmask 254976
        %1557 = vst.msk [vmem:[#allocation2] sm:$0x3] %vm1556, -inf
        %1558 = vst.msk [vmem:[#allocation2 + $0x12] sm:$0x3] %vm1556, -inf
        %v1559 = vld [vmem:[#allocation2 + $0x1] sm:$0xff]
        %v1560 = vld [vmem:[#allocation2 + $0x9] sm:$0xff]
        %v1561 = vld [vmem:[#allocation2 + $0x3] sm:$0xff]
        %v1562 = vld [vmem:[#allocation2 + $0xb] sm:$0xff]
        %v1563 = vmax.f32 %v1559, %v1561
        %v1564 = vmax.f32 %v1560, %v1562
        %v1565 = vmax.f32 %v1540, %v1563
        %v1566 = vmax.f32 %v1541, %v1564
        %v1567 = vld [vmem:[#allocation2] sm:$0xff]
        %v1568 = vld [vmem:[#allocation2 + $0x8] sm:$0xff]
        %v1569 = vld [vmem:[#allocation2 + $0x4] sm:$0xff]
        %v1570 = vld [vmem:[#allocation2 + $0xc] sm:$0xff]
        %v1571 = vmax.f32 %v1567, %v1569
        %v1572 = vmax.f32 %v1568, %v1570
        %v1573 = vmax.f32 %v1565, %v1571
        %v1574 = vmax.f32 %v1566, %v1572
        %v1575 = vlaneseq
        %v1576 = vand.u32 %v1575, 127
        %vm1577 = vcmp.lt.s32.totalorder %v1576, 16
        %v1578 = vsel %vm1577, %v1552, %v1573
        %v1579 = vsel %vm1577, %v1553, %v1574
        %vm1580 = vcmp.gt.f32.partialorder %v1578, 0.0
        %vm1581 = vcmp.gt.f32.partialorder %v1579, 0.0
        %v1582 = vmul.f32 %v1578, 0.2
        %v1583 = vmul.f32 %v1579, 0.2
        %v1584 = vsel %vm1580, %v1578, %v1582
        %v1585 = vsel %vm1581, %v1579, %v1583
        %vm1586 = vcmp.gt.f32.partialorder %v710, 0.0
        %vm1587 = vcmp.gt.f32.partialorder %v711, 0.0
        %v1588 = vmul.f32 %v710, 0.2
        %v1589 = vmul.f32 %v711, 0.2
        %v1590 = vsel %vm1586, %v710, %v1588
        %v1591 = vsel %vm1587, %v711, %v1589
        %v1592 = vadd.f32 %v1584, %v1590
        %v1593 = vadd.f32 %v1585, %v1591
        %v1594 = vadd.f32 %v1592, %v303
        %v1595 = vadd.f32 %v1593, %v304
        %1596 = vxpose.xlu0.b32.start [1/16] %v1594, 128
        %1597 = vxpose.xlu0.b32.cont [2/16] %v1595, 128
        %1598 = vxpose.xlu0.b32.cont [3/16] 0.0, 128
        %1599 = vxpose.xlu0.b32.cont [4/16] 0.0, 128
        %1600 = vxpose.xlu0.b32.cont [5/16] 0.0, 128
        %1601 = vxpose.xlu0.b32.cont [6/16] 0.0, 128
        %1602 = vxpose.xlu0.b32.cont [7/16] 0.0, 128
        %1603 = vxpose.xlu0.b32.cont [8/16] 0.0, 128
        %1604 = vxpose.xlu0.b32.cont [9/16] 0.0, 128
        %1605 = vxpose.xlu0.b32.cont [10/16] 0.0, 128
        %1606 = vxpose.xlu0.b32.cont [11/16] 0.0, 128
        %1607 = vxpose.xlu0.b32.cont [12/16] 0.0, 128
        %1608 = vxpose.xlu0.b32.cont [13/16] 0.0, 128
        %1609 = vxpose.xlu0.b32.cont [14/16] 0.0, 128
        %1610 = vxpose.xlu0.b32.cont [15/16] 0.0, 128
        %1611 = vxpose.xlu0.b32.end [16/16] 0.0, 128
        %v1612 = vpop.trf.xlu0
        %v1613 = vpop.trf.xlu0
        %v1614 = vpop.trf.xlu0
        %v1615 = vpop.trf.xlu0
        %v1616 = vpop.trf.xlu0
        %v1617 = vpop.trf.xlu0
        %v1618 = vpop.trf.xlu0
        %v1619 = vpop.trf.xlu0
        %v1620 = vpop.trf.xlu0
        %v1621 = vpop.trf.xlu0
        %v1622 = vpop.trf.xlu0
        %v1623 = vpop.trf.xlu0
        %v1624 = vpop.trf.xlu0
        %v1625 = vpop.trf.xlu0
        %v1626 = vpop.trf.xlu0
        %v1627 = vpop.trf.xlu0
        %vm1628 = vcmask 130048
        %1629 = vst.msk [vmem:[%s281] sm:$0xff] %vm1628, %v1612
        %1630 = vst.msk [vmem:[%s281 + $0x8] sm:$0xff] %vm1628, %v1613
        %1631 = vst.msk [vmem:[%s281 + $0x10] sm:$0xff] %vm1628, %v1614
        %1632 = vst.msk [vmem:[%s281 + $0x18] sm:$0xff] %vm1628, %v1615
        %p1633 = scmp.lt.s32.totalorder %s19, 1
        %s1634 = scalar_select %p1633, %s19, 1
        %s1635 = smul.addr %s1634, 4
        %s1636 = smul.addr %s1635, 8
        %s1637 = scalar_lea.vmem %s6, %s1636
        // Predicated region
        $region53: #{_lambda_.1} parent=43 // pred_check
          %p1638 = pneg %p168
        $region54: #{_lambda_.1} parent=43 // pred_check_branch
          %1640 = sbr.rel (%p1638) target = $region56
        $region55: #{_lambda_.1} parent=43 // pred_region
          _
        $region56: #{_lambda_.1} parent=43 // pred_fallthru
          _
      $region44: #{_lambda_.1} parent=5 // pred_fallthru
        _
      %p1641 = scmp.le.s32.totalorder 2, %s14
      // Predicated region
      $region57: #{_lambda_.1} parent=5 // pred_check
        %p1642 = pneg %p1641
      $region58: #{_lambda_.1} parent=5 // pred_check_branch
        %1644 = sbr.rel (%p1642) target = $region60
      $region59: #{_lambda_.1} parent=5 // pred_region
        %s1645 = ssub.s32 %s14, 2
        // Predicated region
        $region61: #{_lambda_.1} parent=59 // pred_check
          %p1646 = pneg %p174
        $region62: #{_lambda_.1} parent=59 // pred_check_branch
          %1648 = sbr.rel (%p1646) target = $region64
        $region63: #{_lambda_.1} parent=59 // pred_region
          %p1649 = scmp.lt.s32.totalorder %s20, 1
          %s1650 = scalar_select %p1649, %s20, 1
          %s1651 = smul.addr %s1650, 4
          %s1652 = smul.addr %s1651, 8
          %s1653 = scalar_lea.vmem %s6, %s1652
        $region64: #{_lambda_.1} parent=59 // pred_fallthru
          _
      $region60: #{_lambda_.1} parent=5 // pred_fallthru
        _
    $region6: #{_lambda_.1} parent=1 // loop_footer
      %s18 = sadd.s32 1, %s14
    $region7: #{_lambda_.1} parent=1 // loop_footer_branch
      %13 = sbr.rel target = $region3
    $region8: #{_lambda_.1} parent=1 // loop_exit
      _
    %1654 = vsyncpa [#allocation4], 1
    %s1655 = scalar_lea.sflag [#allocation4], 1
    %1656 = vsyncpa %s1655, 1
    %1657 = vsyncpa [#allocation6], 1

</llo_original>
